<compile_context>
chip_gen: v7x
topology: tpu7x:2x2x1
jax: 0.10.0
libtpu: 0.0.40
codegen_flags: <defaults>
</compile_context>

<pallas_src>
import functools

import numpy as np
import jax
import jax.numpy as jnp
from jax.experimental import pallas as pl
from jax.experimental.pallas import tpu as pltpu


# ----------------------------------------------------------------------------
# Glue: ROIAlign bilinear-interpolation matrix (batch-independent, scatter-add)
# ----------------------------------------------------------------------------
def build_roi_interp_matrix(bboxes, H, W, P, spatial_scale, aligned=True,
                            max_grid=None):
    """Returns M: [K, P*P, H*W] such that
    ROIAlign(feat)[k] = (M[k] @ feat[batch_idx[k]].reshape(H*W, C)).reshape(P, P, C),
    matching torchvision roi_align with sampling_ratio=0 / aligned flag."""
    if max_grid is None:
        max_grid = int(np.ceil(max(H, W) / P)) + 1
    K = bboxes.shape[0]
    x1, y1, x2, y2 = bboxes[:, 1], bboxes[:, 2], bboxes[:, 3], bboxes[:, 4]
    off = 0.5 if aligned else 0.0
    rsw = x1 * spatial_scale - off
    rsh = y1 * spatial_scale - off
    roi_w = x2 * spatial_scale - off - rsw
    roi_h = y2 * spatial_scale - off - rsh
    if not aligned:
        roi_w = jnp.maximum(roi_w, 1.0)
        roi_h = jnp.maximum(roi_h, 1.0)
    bin_h = roi_h / P
    bin_w = roi_w / P
    grid_h = jnp.ceil(roi_h / P).astype(jnp.int32)   # sampling_ratio == 0
    grid_w = jnp.ceil(roi_w / P).astype(jnp.int32)
    count = jnp.maximum(grid_h * grid_w, 1).astype(jnp.float32)

    def axis_pieces(start, bin_sz, grid, size):
        gs = jnp.maximum(grid, 1).astype(jnp.float32)            # [K]
        pbin = jnp.arange(P, dtype=jnp.float32)                  # [P]
        samp = jnp.arange(max_grid, dtype=jnp.float32)           # [G]
        c = (start[:, None, None]
             + pbin[None, :, None] * bin_sz[:, None, None]
             + (samp[None, None, :] + 0.5) * bin_sz[:, None, None]
             / gs[:, None, None])                                # [K,P,G]
        in_range = (c >= -1.0) & (c <= float(size))
        samp_ok = jnp.arange(max_grid)[None, None, :] < grid[:, None, None]
        valid = (in_range & samp_ok).astype(jnp.float32)         # [K,P,G]
        cc = jnp.maximum(c, 0.0)
        lo = jnp.minimum(jnp.floor(cc).astype(jnp.int32), size - 1)
        at_edge = lo >= size - 1
        hi = jnp.where(at_edge, size - 1, lo + 1)
        cc = jnp.where(at_edge, lo.astype(jnp.float32), cc)
        frac = cc - lo.astype(jnp.float32)
        wgt = jnp.stack([1.0 - frac, frac], axis=-1)             # [K,P,G,2]
        idx = jnp.stack([lo, hi], axis=-1)                       # [K,P,G,2]
        return wgt, idx, valid

    wy, iy, vy = axis_pieces(rsh, bin_h, grid_h, H)
    wx, ix, vx = axis_pieces(rsw, bin_w, grid_w, W)

    # combined weight / flat spatial index at [k, ph, pw, gy, cy, gx, cx]
    w_full = (wy[:, :, None, :, :, None, None]
              * vy[:, :, None, :, None, None, None]
              * wx[:, None, :, None, None, :, :]
              * vx[:, None, :, None, None, :, None])
    w_full = w_full / count[:, None, None, None, None, None, None]
    idx_full = (iy[:, :, None, :, :, None, None] * W
                + ix[:, None, :, None, None, :, :])
    idx_full = jnp.broadcast_to(idx_full, w_full.shape)

    # scatter-add instead of a dense one-hot intermediate (M is >90% zeros).
    w_flat = w_full.reshape(K, P, P, -1)
    idx_flat = idx_full.reshape(K, P, P, -1)
    m = jnp.zeros((K, P, P, H * W), jnp.float32)
    k_ix = jnp.arange(K)[:, None, None, None]
    ph_ix = jnp.arange(P)[None, :, None, None]
    pw_ix = jnp.arange(P)[None, None, :, None]
    m = m.at[k_ix, ph_ix, pw_ix, idx_flat].add(w_flat)
    return m.reshape(K, P * P, H * W)


# ----------------------------------------------------------------------------
# Pallas kernel: temporal avg-pool (T-grid accumulator) + ROIAlign-as-matmul +
#                spatial max-pool, per channel block.
# ----------------------------------------------------------------------------
def _roi_head_pathway_kernel(bidx_ref, m_ref, x_ref, out_ref, acc_ref, fbox_ref,
                             *, inv_t, num_boxes):
    # bidx_ref: SMEM [K] int32 (scalar prefetch) - per-box batch index
    # m_ref:    [K, P*P, H*W] bf16   x_ref: [1, N, H*W, c_blk]
    # out_ref:  [K, c_blk] f32
    # acc_ref:  VMEM [N, H*W, c_blk] f32     fbox_ref: VMEM [K, H*W, c_blk] bf16
    t = pl.program_id(1)

    @pl.when(t == 0)
    def _init():
        acc_ref[...] = jnp.zeros_like(acc_ref)

    # Temporal AvgPool3d([T,1,1]): accumulate this time slab (f32 accumulator).
    acc_ref[...] += x_ref[0].astype(jnp.float32)

    @pl.when(t == pl.num_programs(1) - 1)
    def _finalize():
        # Per-box batch selection: copy the accumulated (and 1/T-scaled)
        # feature map of each box's batch element into the bf16 scratch.
        for b in range(num_boxes):
            fbox_ref[b] = (acc_ref[bidx_ref[b]] * inv_t).astype(jnp.bfloat16)
        # ROIAlign (aligned, sampling_ratio=0) as a batched bilinear-interp
        # matmul on the MXU: roi[k, p, c] = sum_h M[k, p, h] * fbox[k, h, c]
        roi = jnp.einsum('kph,khc->kpc', m_ref[...], fbox_ref[...],
                         preferred_element_type=jnp.float32)     # [K, PP, cb]
        # Spatial MaxPool2d(resolution, stride=1): vectorized max over the
        # P*P bins, one lane-dense store of the whole [K, c_blk] tile.
        out_ref[...] = jnp.max(roi, axis=1)


def _roi_head_pathway(x_tnhc, m3, bidx, num_boxes, pp):
    T, N, HW, C = x_tnhc.shape
    K = num_boxes

    # Channel tiling: full C when small; multiples of 128 for large C so the
    # resident footprint fits v7x's 64 MiB VMEM and the C axis can be split
    # across TensorCores ("parallel").
    c_blk = C
    if C % 128 == 0 and C > 512:
        for cand in (512, 256, 128):
            if C % cand == 0:
                c_blk = cand
                break
    n_cb = C // c_blk

    kernel = functools.partial(_roi_head_pathway_kernel,
                               inv_t=1.0 / T, num_boxes=K)

    itemsize_x = jnp.dtype(x_tnhc.dtype).itemsize
    est = (2 * N * HW * c_blk * itemsize_x    # double-buffered x time slab
           + N * HW * c_blk * 4               # f32 temporal accumulator
           + K * HW * c_blk * 2               # bf16 per-box gathered feat
           + K * pp * c_blk * 4               # roi intermediate
           + 2 * K * pp * HW * 2              # M (bf16)
           + 2 * K * c_blk * 4)               # output block
    vmem_limit = int(min(max(2 * est + (8 << 20), 16 << 20), 48 << 20))

    flops = 2.0 * K * pp * HW * C + 1.0 * T * N * HW * C
    bytes_accessed = (x_tnhc.size * itemsize_x + K * pp * HW * 2
                      + K * C * 4 + K * 4)
    cost = pl.CostEstimate(flops=int(flops), transcendentals=0,
                           bytes_accessed=int(bytes_accessed))

    return pl.pallas_call(
        kernel,
        out_shape=jax.ShapeDtypeStruct((K, C), jnp.float32),
        grid_spec=pltpu.PrefetchScalarGridSpec(
            num_scalar_prefetch=1,                       # bidx -> SMEM
            grid=(n_cb, T),                              # reduction axis (T) last
            in_specs=[
                pl.BlockSpec((K, pp, HW), lambda c, t, b: (0, 0, 0)),
                pl.BlockSpec((1, N, HW, c_blk), lambda c, t, b: (t, 0, 0, c)),
            ],
            out_specs=pl.BlockSpec((K, c_blk), lambda c, t, b: (0, c)),
            scratch_shapes=[
                pltpu.VMEM((N, HW, c_blk), jnp.float32),    # temporal accumulator
                pltpu.VMEM((K, HW, c_blk), jnp.bfloat16),   # per-box gathered feat
            ],
        ),
        compiler_params=pltpu.CompilerParams(
            dimension_semantics=("parallel", "arbitrary"),
            vmem_limit_bytes=vmem_limit),
        cost_estimate=cost,
    )(bidx, m3, x_tnhc)


def resnet_roi_head_forward(inputs, bboxes, resolution, scale_factor,
                            aligned=True):
    """inputs: list of [N, C, T, H, W]; bboxes: [K, 5] (batch_idx, x1, y1, x2, y2).
    Returns [K, sum(C_p), 1, 1], matching the given PyTorch forward (dropout=0)."""
    num_boxes = bboxes.shape[0]
    bidx = bboxes[:, 0].astype(jnp.int32)
    pool_out = []
    m_cache = {}   # M is batch-independent; reuse across pathways that share config
    for p, x in enumerate(inputs):
        N, C, T, Hf, Wf = x.shape
        assert resolution[p][0] == resolution[p][1], "square ROIAlign output assumed"
        P = resolution[p][0]
        spatial_scale = 1.0 / scale_factor[p]
        key = (P, Hf, Wf, float(spatial_scale), bool(aligned))
        if key not in m_cache:
            m_cache[key] = build_roi_interp_matrix(
                bboxes, Hf, Wf, P, spatial_scale, aligned).astype(jnp.bfloat16)
        m3 = m_cache[key]
        # NCTHW -> [T, N, H*W, C]  (channels last -> lanes)
        x_tnhc = jnp.transpose(x, (2, 0, 3, 4, 1)).reshape(T, N, Hf * Wf, C)
        pool_out.append(_roi_head_pathway(x_tnhc, m3, bidx, num_boxes, P * P))
    xcat = jnp.concatenate(pool_out, axis=1)                      # [K, sum C_p]
    # dropout_rate == 0.0 -> no dropout; projection / softmax exist in __init__
    # but are not applied by the reference forward(), so none is applied here.
    # TODO(synk): pathways with different T are kept as separate pallas_calls
    # (they cannot share one T-grid); M construction is shared when configs match.
    return xcat[:, :, None, None]                                 # [K, sumC, 1, 1]


# ----------------------------------------------------------------------------
# Independent numpy reference (torchvision roi_align semantics) for validation
# ----------------------------------------------------------------------------
def _bilinear_np(fm, y, x):
    C, H, W = fm.shape
    if y < -1.0 or y > H or x < -1.0 or x > W:
        return np.zeros((C,), np.float32)
    y, x = max(y, 0.0), max(x, 0.0)
    yl, xl = int(y), int(x)
    if yl >= H - 1:
        yh = yl = H - 1
        y = float(yl)
    else:
        yh = yl + 1
    if xl >= W - 1:
        xh = xl = W - 1
        x = float(xl)
    else:
        xh = xl + 1
    ly, lx = y - yl, x - xl
    hy, hx = 1.0 - ly, 1.0 - lx
    return (hy * hx * fm[:, yl, xl] + hy * lx * fm[:, yl, xh]
            + ly * hx * fm[:, yh, xl] + ly * lx * fm[:, yh, xh]).astype(np.float32)


def roi_head_reference(inputs, bboxes, resolution, scale_factor, aligned=True):
    outs = []
    K = bboxes.shape[0]
    for p, x in enumerate(inputs):
        feat = x.mean(axis=2)                                     # AvgPool3d + squeeze
        N, C, H, W = feat.shape
        P = resolution[p][0]
        s = 1.0 / scale_factor[p]
        off = 0.5 if aligned else 0.0
        out = np.zeros((K, C), np.float32)
        for b in range(K):
            n = int(bboxes[b, 0])
            bx1, by1, bx2, by2 = [float(v) for v in bboxes[b, 1:]]
            rsw, rsh = bx1 * s - off, by1 * s - off
            rw, rh = bx2 * s - off - rsw, by2 * s - off - rsh
            if not aligned:
                rw, rh = max(rw, 1.0), max(rh, 1.0)
            bh, bw = rh / P, rw / P
            gh, gw = int(np.ceil(rh / P)), int(np.ceil(rw / P))
            cnt = max(gh * gw, 1)
            bins = np.zeros((P, P, C), np.float32)
            for ph in range(P):
                for pw in range(P):
                    acc = np.zeros((C,), np.float32)
                    for iy in range(gh):
                        yy = rsh + ph * bh + (iy + 0.5) * bh / gh
                        for ix in range(gw):
                            xx = rsw + pw * bw + (ix + 0.5) * bw / gw
                            acc += _bilinear_np(feat[n], yy, xx)
                    bins[ph, pw] = acc / cnt
            out[b] = bins.reshape(P * P, C).max(axis=0)           # MaxPool2d(res)
        outs.append(out)
    return np.concatenate(outs, axis=1)[:, :, None, None]


if __name__ == "__main__":
    # Small SlowFast-like config
    N = 2                      # batch
    H = W = 8                  # feature-map spatial size
    dim_in = [16, 8]           # channels per pathway
    t_dims = [4, 8]            # temporal extents
    resolution = [[4, 4], [4, 4]]           # ROIAlign output size
    scale_factor = [16, 16]                 # spatial_scale = 1/16
    num_boxes = 3

    key = jax.random.PRNGKey(0)
    k0, k1 = jax.random.split(key, 2)
    inputs = [
        jax.random.normal(k0, (N, dim_in[0], t_dims[0], H, W), jnp.float32),
        jax.random.normal(k1, (N, dim_in[1], t_dims[1], H, W), jnp.float32),
    ]
    # boxes in the original (image) coordinate frame: (batch_idx, x1, y1, x2, y2)
    bboxes = jnp.array([[0.0, 8.0, 12.0, 60.0, 90.0],
                        [1.0, 0.0, 0.0, 127.0, 127.0],
                        [0.0, 30.0, 40.0, 50.0, 120.0]], jnp.float32)

    fwd = jax.jit(functools.partial(resnet_roi_head_forward,
                                    resolution=resolution,
                                    scale_factor=scale_factor))
    out = jax.block_until_ready(fwd(inputs, bboxes))

    ref = roi_head_reference([np.asarray(x) for x in inputs],
                             np.asarray(bboxes), resolution, scale_factor)
    assert out.shape == (num_boxes, sum(dim_in), 1, 1), out.shape
    np.testing.assert_allclose(np.asarray(out), ref, rtol=2e-2, atol=2e-2)
    print("KERNEL_OK")
</pallas_src>

<mosaic_0001>
module attributes {stable_mosaic.version = 11 : i64} {
  func.func private @main(%arg0: i32) attributes {dimension_semantics = [#tpu.dimension_semantics<core_parallel>], iteration_bounds = array<i64: 2>, tpu.core_type = #tpu.core_type<sc_scalar_subcore>, window_params = []} {
    return
  }
}

module attributes {stable_mosaic.version = 11 : i64} {
  func.func private @main(%arg0: i32) attributes {dimension_semantics = [#tpu.dimension_semantics<core_parallel>], iteration_bounds = array<i64: 2>, tpu.core_type = #tpu.core_type<sc_scalar_subcore>, window_params = []} {
    return
  }
}

module attributes {stable_mosaic.version = 11 : i64} {
  func.func @_roi_head_pathway_kernel(%arg0: i32, %arg1: i32, %arg2: memref<3xi32, #tpu.memory_space<smem>>, %arg3: memref<3x16x64xbf16, #tpu.memory_space<vmem>>, %arg4: memref<1x2x64x8xf32, #tpu.memory_space<vmem>>, %arg5: memref<3x8xf32, #tpu.memory_space<vmem>>, %arg6: memref<2x64x8xf32, #tpu.memory_space<vmem>>, %arg7: memref<3x64x8xbf16, #tpu.memory_space<vmem>>) attributes {dimension_semantics = [#tpu.dimension_semantics<parallel>, #tpu.dimension_semantics<arbitrary>], iteration_bounds = array<i64: 1, 8>, scalar_prefetch = 1 : i64, scratch_operands = 2 : i64, tpu.core_type = #tpu.core_type<tc>, window_params = [{pipeline_mode = #tpu.pipeline_mode<synchronous>, transform_indices = @transform_0, window_bounds = array<i64: 3, 16, 64>}, {transform_indices = @transform_1, window_bounds = array<i64: 1, 2, 64, 8>}, {transform_indices = @transform_2, window_bounds = array<i64: 3, 8>}]} {
    %c0_i32 = arith.constant 0 : i32
    %0 = arith.cmpi eq, %arg1, %c0_i32 : i32
    %1 = arith.extui %0 : i1 to i32
    %c0_i32_0 = arith.constant 0 : i32
    %2 = arith.cmpi ne, %1, %c0_i32_0 : i32
    scf.if %2 {
      %cst = arith.constant 0.000000e+00 : f32
      %11 = vector.broadcast %cst : f32 to vector<2x64x8xf32>
      %c0_11 = arith.constant 0 : index
      %c0_12 = arith.constant 0 : index
      %c0_13 = arith.constant 0 : index
      %12 = vector.load %arg6[%c0_11, %c0_12, %c0_13] : memref<2x64x8xf32, #tpu.memory_space<vmem>>, vector<2x64x8xf32>
      tpu.vector_store %arg6[%c0_11, %c0_12, %c0_13], %11 {strides = array<i32>} : memref<2x64x8xf32, #tpu.memory_space<vmem>>, vector<2x64x8xf32>,
    } else {
    }
    %c0 = arith.constant 0 : index
    %c0_1 = arith.constant 0 : index
    %c0_2 = arith.constant 0 : index
    %3 = vector.load %arg6[%c0, %c0_1, %c0_2] : memref<2x64x8xf32, #tpu.memory_space<vmem>>, vector<2x64x8xf32>
    %c0_3 = arith.constant 0 : index
    %c0_4 = arith.constant 0 : index
    %c0_5 = arith.constant 0 : index
    %c0_6 = arith.constant 0 : index
    %4 = vector.load %arg4[%c0_3, %c0_4, %c0_5, %c0_6] : memref<1x2x64x8xf32, #tpu.memory_space<vmem>>, vector<1x2x64x8xf32>
    %5 = vector.shape_cast %4 : vector<1x2x64x8xf32> to vector<2x64x8xf32>
    %6 = arith.addf %3, %5 : vector<2x64x8xf32>
    %c0_7 = arith.constant 0 : index
    %c0_8 = arith.constant 0 : index
    %c0_9 = arith.constant 0 : index
    %7 = vector.load %arg6[%c0_7, %c0_8, %c0_9] : memref<2x64x8xf32, #tpu.memory_space<vmem>>, vector<2x64x8xf32>
    tpu.vector_store %arg6[%c0_7, %c0_8, %c0_9], %6 {strides = array<i32>} : memref<2x64x8xf32, #tpu.memory_space<vmem>>, vector<2x64x8xf32>,
    %c7_i32 = arith.constant 7 : i32
    %8 = arith.cmpi eq, %arg1, %c7_i32 : i32
    %9 = arith.extui %8 : i1 to i32
    %c0_i32_10 = arith.constant 0 : i32
    %10 = arith.cmpi ne, %9, %c0_i32_10 : i32
    scf.if %10 {
      %c0_11 = arith.constant 0 : index
      %11 = memref.load %arg2[%c0_11] : memref<3xi32, #tpu.memory_space<smem>>
      %12 = arith.index_cast %11 : i32 to index
      %c0_12 = arith.constant 0 : index
      %c0_13 = arith.constant 0 : index
      %13 = vector.load %arg6[%12, %c0_12, %c0_13] : memref<2x64x8xf32, #tpu.memory_space<vmem>>, vector<1x64x8xf32>
      %14 = vector.shape_cast %13 : vector<1x64x8xf32> to vector<64x8xf32>
      %cst = arith.constant 1.250000e-01 : f32
      %15 = vector.broadcast %cst : f32 to vector<64x8xf32>
      %16 = arith.mulf %14, %15 : vector<64x8xf32>
      %17 = arith.truncf %16 : vector<64x8xf32> to vector<64x8xbf16>
      %c0_14 = arith.constant 0 : index
      %c0_15 = arith.constant 0 : index
      %c0_16 = arith.constant 0 : index
      %18 = vector.load %arg7[%c0_14, %c0_15, %c0_16] : memref<3x64x8xbf16, #tpu.memory_space<vmem>>, vector<1x64x8xbf16>
      %19 = vector.shape_cast %18 : vector<1x64x8xbf16> to vector<64x8xbf16>
      %20 = vector.shape_cast %17 : vector<64x8xbf16> to vector<1x64x8xbf16>
      tpu.vector_store %arg7[%c0_14, %c0_15, %c0_16], %20 {strides = array<i32>} : memref<3x64x8xbf16, #tpu.memory_space<vmem>>, vector<1x64x8xbf16>,
      %c1 = arith.constant 1 : index
      %21 = memref.load %arg2[%c1] : memref<3xi32, #tpu.memory_space<smem>>
      %22 = arith.index_cast %21 : i32 to index
      %c0_17 = arith.constant 0 : index
      %c0_18 = arith.constant 0 : index
      %23 = vector.load %arg6[%22, %c0_17, %c0_18] : memref<2x64x8xf32, #tpu.memory_space<vmem>>, vector<1x64x8xf32>
      %24 = vector.shape_cast %23 : vector<1x64x8xf32> to vector<64x8xf32>
      %cst_19 = arith.constant 1.250000e-01 : f32
      %25 = vector.broadcast %cst_19 : f32 to vector<64x8xf32>
      %26 = arith.mulf %24, %25 : vector<64x8xf32>
      %27 = arith.truncf %26 : vector<64x8xf32> to vector<64x8xbf16>
      %c1_20 = arith.constant 1 : index
      %c0_21 = arith.constant 0 : index
      %c0_22 = arith.constant 0 : index
      %28 = vector.load %arg7[%c1_20, %c0_21, %c0_22] : memref<3x64x8xbf16, #tpu.memory_space<vmem>>, vector<1x64x8xbf16>
      %29 = vector.shape_cast %28 : vector<1x64x8xbf16> to vector<64x8xbf16>
      %30 = vector.shape_cast %27 : vector<64x8xbf16> to vector<1x64x8xbf16>
      tpu.vector_store %arg7[%c1_20, %c0_21, %c0_22], %30 {strides = array<i32>} : memref<3x64x8xbf16, #tpu.memory_space<vmem>>, vector<1x64x8xbf16>,
      %c2 = arith.constant 2 : index
      %31 = memref.load %arg2[%c2] : memref<3xi32, #tpu.memory_space<smem>>
      %32 = arith.index_cast %31 : i32 to index
      %c0_23 = arith.constant 0 : index
      %c0_24 = arith.constant 0 : index
      %33 = vector.load %arg6[%32, %c0_23, %c0_24] : memref<2x64x8xf32, #tpu.memory_space<vmem>>, vector<1x64x8xf32>
      %34 = vector.shape_cast %33 : vector<1x64x8xf32> to vector<64x8xf32>
      %cst_25 = arith.constant 1.250000e-01 : f32
      %35 = vector.broadcast %cst_25 : f32 to vector<64x8xf32>
      %36 = arith.mulf %34, %35 : vector<64x8xf32>
      %37 = arith.truncf %36 : vector<64x8xf32> to vector<64x8xbf16>
      %c2_26 = arith.constant 2 : index
      %c0_27 = arith.constant 0 : index
      %c0_28 = arith.constant 0 : index
      %38 = vector.load %arg7[%c2_26, %c0_27, %c0_28] : memref<3x64x8xbf16, #tpu.memory_space<vmem>>, vector<1x64x8xbf16>
      %39 = vector.shape_cast %38 : vector<1x64x8xbf16> to vector<64x8xbf16>
      %40 = vector.shape_cast %37 : vector<64x8xbf16> to vector<1x64x8xbf16>
      tpu.vector_store %arg7[%c2_26, %c0_27, %c0_28], %40 {strides = array<i32>} : memref<3x64x8xbf16, #tpu.memory_space<vmem>>, vector<1x64x8xbf16>,
      %c0_29 = arith.constant 0 : index
      %c0_30 = arith.constant 0 : index
      %c0_31 = arith.constant 0 : index
      %41 = vector.load %arg3[%c0_29, %c0_30, %c0_31] : memref<3x16x64xbf16, #tpu.memory_space<vmem>>, vector<3x16x64xbf16>
      %c0_32 = arith.constant 0 : index
      %c0_33 = arith.constant 0 : index
      %c0_34 = arith.constant 0 : index
      %42 = vector.load %arg7[%c0_32, %c0_33, %c0_34] : memref<3x64x8xbf16, #tpu.memory_space<vmem>>, vector<3x64x8xbf16>
      "tpu.trace_start"() <{level = 10 : i32, message = "kph,khc->kpc"}> : () -> ()
      %cst_35 = arith.constant dense<0.000000e+00> : vector<3x16x8xf32>
      %43 = tpu.matmul %41, %42, %cst_35 {dimension_numbers = #tpu.dot_dimension_numbers<[2], [1], [1], [2], [0, 0, 0, 1, 1, 2], [0], [0]>} : vector<3x16x64xbf16>, vector<3x64x8xbf16>, vector<3x16x8xf32> -> vector<3x16x8xf32>
      "tpu.trace_stop"() : () -> ()
      %cst_36 = arith.constant dense<0xFF800000> : vector<3x8xf32>
      %44 = vector.multi_reduction <maximumf>, %43, %cst_36 [1] : vector<3x16x8xf32> to vector<3x8xf32>
      %c0_37 = arith.constant 0 : index
      %c0_38 = arith.constant 0 : index
      %45 = vector.load %arg5[%c0_37, %c0_38] : memref<3x8xf32, #tpu.memory_space<vmem>>, vector<3x8xf32>
      tpu.vector_store %arg5[%c0_37, %c0_38], %44 {strides = array<i32>} : memref<3x8xf32, #tpu.memory_space<vmem>>, vector<3x8xf32>,
    } else {
    }
    return
  }
  func.func @transform_0(%arg0: i32, %arg1: i32, %arg2: memref<3xi32, #tpu.memory_space<smem>>) -> (i32, i32, i32) {
    %c0_i32 = arith.constant 0 : i32
    %c0_i32_0 = arith.constant 0 : i32
    %c0_i32_1 = arith.constant 0 : i32
    %c0_i32_2 = arith.constant 0 : i32
    return %c0_i32, %c0_i32_0, %c0_i32_1 : i32, i32, i32
  }
  func.func @transform_1(%arg0: i32, %arg1: i32, %arg2: memref<3xi32, #tpu.memory_space<smem>>) -> (i32, i32, i32, i32) {
    %c0_i32 = arith.constant 0 : i32
    %c0_i32_0 = arith.constant 0 : i32
    %c0_i32_1 = arith.constant 0 : i32
    return %arg1, %c0_i32, %c0_i32_0, %arg0 : i32, i32, i32, i32
  }
  func.func @transform_2(%arg0: i32, %arg1: i32, %arg2: memref<3xi32, #tpu.memory_space<smem>>) -> (i32, i32) {
    %c0_i32 = arith.constant 0 : i32
    %c0_i32_0 = arith.constant 0 : i32
    return %c0_i32, %arg0 : i32, i32
  }
}

module attributes {stable_mosaic.version = 11 : i64} {
  func.func @_roi_head_pathway_kernel(%arg0: i32, %arg1: i32, %arg2: memref<3xi32, #tpu.memory_space<smem>>, %arg3: memref<3x16x64xbf16, #tpu.memory_space<vmem>>, %arg4: memref<1x2x64x16xf32, #tpu.memory_space<vmem>>, %arg5: memref<3x16xf32, #tpu.memory_space<vmem>>, %arg6: memref<2x64x16xf32, #tpu.memory_space<vmem>>, %arg7: memref<3x64x16xbf16, #tpu.memory_space<vmem>>) attributes {dimension_semantics = [#tpu.dimension_semantics<parallel>, #tpu.dimension_semantics<arbitrary>], iteration_bounds = array<i64: 1, 4>, scalar_prefetch = 1 : i64, scratch_operands = 2 : i64, tpu.core_type = #tpu.core_type<tc>, window_params = [{pipeline_mode = #tpu.pipeline_mode<synchronous>, transform_indices = @transform_0, window_bounds = array<i64: 3, 16, 64>}, {transform_indices = @transform_1, window_bounds = array<i64: 1, 2, 64, 16>}, {transform_indices = @transform_2, window_bounds = array<i64: 3, 16>}]} {
    %c0_i32 = arith.constant 0 : i32
    %0 = arith.cmpi eq, %arg1, %c0_i32 : i32
    %1 = arith.extui %0 : i1 to i32
    %c0_i32_0 = arith.constant 0 : i32
    %2 = arith.cmpi ne, %1, %c0_i32_0 : i32
    scf.if %2 {
      %cst = arith.constant 0.000000e+00 : f32
      %11 = vector.broadcast %cst : f32 to vector<2x64x16xf32>
      %c0_11 = arith.constant 0 : index
      %c0_12 = arith.constant 0 : index
      %c0_13 = arith.constant 0 : index
      %12 = vector.load %arg6[%c0_11, %c0_12, %c0_13] : memref<2x64x16xf32, #tpu.memory_space<vmem>>, vector<2x64x16xf32>
      tpu.vector_store %arg6[%c0_11, %c0_12, %c0_13], %11 {strides = array<i32>} : memref<2x64x16xf32, #tpu.memory_space<vmem>>, vector<2x64x16xf32>,
    } else {
    }
    %c0 = arith.constant 0 : index
    %c0_1 = arith.constant 0 : index
    %c0_2 = arith.constant 0 : index
    %3 = vector.load %arg6[%c0, %c0_1, %c0_2] : memref<2x64x16xf32, #tpu.memory_space<vmem>>, vector<2x64x16xf32>
    %c0_3 = arith.constant 0 : index
    %c0_4 = arith.constant 0 : index
    %c0_5 = arith.constant 0 : index
    %c0_6 = arith.constant 0 : index
    %4 = vector.load %arg4[%c0_3, %c0_4, %c0_5, %c0_6] : memref<1x2x64x16xf32, #tpu.memory_space<vmem>>, vector<1x2x64x16xf32>
    %5 = vector.shape_cast %4 : vector<1x2x64x16xf32> to vector<2x64x16xf32>
    %6 = arith.addf %3, %5 : vector<2x64x16xf32>
    %c0_7 = arith.constant 0 : index
    %c0_8 = arith.constant 0 : index
    %c0_9 = arith.constant 0 : index
    %7 = vector.load %arg6[%c0_7, %c0_8, %c0_9] : memref<2x64x16xf32, #tpu.memory_space<vmem>>, vector<2x64x16xf32>
    tpu.vector_store %arg6[%c0_7, %c0_8, %c0_9], %6 {strides = array<i32>} : memref<2x64x16xf32, #tpu.memory_space<vmem>>, vector<2x64x16xf32>,
    %c3_i32 = arith.constant 3 : i32
    %8 = arith.cmpi eq, %arg1, %c3_i32 : i32
    %9 = arith.extui %8 : i1 to i32
    %c0_i32_10 = arith.constant 0 : i32
    %10 = arith.cmpi ne, %9, %c0_i32_10 : i32
    scf.if %10 {
      %c0_11 = arith.constant 0 : index
      %11 = memref.load %arg2[%c0_11] : memref<3xi32, #tpu.memory_space<smem>>
      %12 = arith.index_cast %11 : i32 to index
      %c0_12 = arith.constant 0 : index
      %c0_13 = arith.constant 0 : index
      %13 = vector.load %arg6[%12, %c0_12, %c0_13] : memref<2x64x16xf32, #tpu.memory_space<vmem>>, vector<1x64x16xf32>
      %14 = vector.shape_cast %13 : vector<1x64x16xf32> to vector<64x16xf32>
      %cst = arith.constant 2.500000e-01 : f32
      %15 = vector.broadcast %cst : f32 to vector<64x16xf32>
      %16 = arith.mulf %14, %15 : vector<64x16xf32>
      %17 = arith.truncf %16 : vector<64x16xf32> to vector<64x16xbf16>
      %c0_14 = arith.constant 0 : index
      %c0_15 = arith.constant 0 : index
      %c0_16 = arith.constant 0 : index
      %18 = vector.load %arg7[%c0_14, %c0_15, %c0_16] : memref<3x64x16xbf16, #tpu.memory_space<vmem>>, vector<1x64x16xbf16>
      %19 = vector.shape_cast %18 : vector<1x64x16xbf16> to vector<64x16xbf16>
      %20 = vector.shape_cast %17 : vector<64x16xbf16> to vector<1x64x16xbf16>
      tpu.vector_store %arg7[%c0_14, %c0_15, %c0_16], %20 {strides = array<i32>} : memref<3x64x16xbf16, #tpu.memory_space<vmem>>, vector<1x64x16xbf16>,
      %c1 = arith.constant 1 : index
      %21 = memref.load %arg2[%c1] : memref<3xi32, #tpu.memory_space<smem>>
      %22 = arith.index_cast %21 : i32 to index
      %c0_17 = arith.constant 0 : index
      %c0_18 = arith.constant 0 : index
      %23 = vector.load %arg6[%22, %c0_17, %c0_18] : memref<2x64x16xf32, #tpu.memory_space<vmem>>, vector<1x64x16xf32>
      %24 = vector.shape_cast %23 : vector<1x64x16xf32> to vector<64x16xf32>
      %cst_19 = arith.constant 2.500000e-01 : f32
      %25 = vector.broadcast %cst_19 : f32 to vector<64x16xf32>
      %26 = arith.mulf %24, %25 : vector<64x16xf32>
      %27 = arith.truncf %26 : vector<64x16xf32> to vector<64x16xbf16>
      %c1_20 = arith.constant 1 : index
      %c0_21 = arith.constant 0 : index
      %c0_22 = arith.constant 0 : index
      %28 = vector.load %arg7[%c1_20, %c0_21, %c0_22] : memref<3x64x16xbf16, #tpu.memory_space<vmem>>, vector<1x64x16xbf16>
      %29 = vector.shape_cast %28 : vector<1x64x16xbf16> to vector<64x16xbf16>
      %30 = vector.shape_cast %27 : vector<64x16xbf16> to vector<1x64x16xbf16>
      tpu.vector_store %arg7[%c1_20, %c0_21, %c0_22], %30 {strides = array<i32>} : memref<3x64x16xbf16, #tpu.memory_space<vmem>>, vector<1x64x16xbf16>,
      %c2 = arith.constant 2 : index
      %31 = memref.load %arg2[%c2] : memref<3xi32, #tpu.memory_space<smem>>
      %32 = arith.index_cast %31 : i32 to index
      %c0_23 = arith.constant 0 : index
      %c0_24 = arith.constant 0 : index
      %33 = vector.load %arg6[%32, %c0_23, %c0_24] : memref<2x64x16xf32, #tpu.memory_space<vmem>>, vector<1x64x16xf32>
      %34 = vector.shape_cast %33 : vector<1x64x16xf32> to vector<64x16xf32>
      %cst_25 = arith.constant 2.500000e-01 : f32
      %35 = vector.broadcast %cst_25 : f32 to vector<64x16xf32>
      %36 = arith.mulf %34, %35 : vector<64x16xf32>
      %37 = arith.truncf %36 : vector<64x16xf32> to vector<64x16xbf16>
      %c2_26 = arith.constant 2 : index
      %c0_27 = arith.constant 0 : index
      %c0_28 = arith.constant 0 : index
      %38 = vector.load %arg7[%c2_26, %c0_27, %c0_28] : memref<3x64x16xbf16, #tpu.memory_space<vmem>>, vector<1x64x16xbf16>
      %39 = vector.shape_cast %38 : vector<1x64x16xbf16> to vector<64x16xbf16>
      %40 = vector.shape_cast %37 : vector<64x16xbf16> to vector<1x64x16xbf16>
      tpu.vector_store %arg7[%c2_26, %c0_27, %c0_28], %40 {strides = array<i32>} : memref<3x64x16xbf16, #tpu.memory_space<vmem>>, vector<1x64x16xbf16>,
      %c0_29 = arith.constant 0 : index
      %c0_30 = arith.constant 0 : index
      %c0_31 = arith.constant 0 : index
      %41 = vector.load %arg3[%c0_29, %c0_30, %c0_31] : memref<3x16x64xbf16, #tpu.memory_space<vmem>>, vector<3x16x64xbf16>
      %c0_32 = arith.constant 0 : index
      %c0_33 = arith.constant 0 : index
      %c0_34 = arith.constant 0 : index
      %42 = vector.load %arg7[%c0_32, %c0_33, %c0_34] : memref<3x64x16xbf16, #tpu.memory_space<vmem>>, vector<3x64x16xbf16>
      "tpu.trace_start"() <{level = 10 : i32, message = "kph,khc->kpc"}> : () -> ()
      %cst_35 = arith.constant dense<0.000000e+00> : vector<3x16x16xf32>
      %43 = tpu.matmul %41, %42, %cst_35 {dimension_numbers = #tpu.dot_dimension_numbers<[2], [1], [1], [2], [0, 0, 0, 1, 1, 2], [0], [0]>} : vector<3x16x64xbf16>, vector<3x64x16xbf16>, vector<3x16x16xf32> -> vector<3x16x16xf32>
      "tpu.trace_stop"() : () -> ()
      %cst_36 = arith.constant dense<0xFF800000> : vector<3x16xf32>
      %44 = vector.multi_reduction <maximumf>, %43, %cst_36 [1] : vector<3x16x16xf32> to vector<3x16xf32>
      %c0_37 = arith.constant 0 : index
      %c0_38 = arith.constant 0 : index
      %45 = vector.load %arg5[%c0_37, %c0_38] : memref<3x16xf32, #tpu.memory_space<vmem>>, vector<3x16xf32>
      tpu.vector_store %arg5[%c0_37, %c0_38], %44 {strides = array<i32>} : memref<3x16xf32, #tpu.memory_space<vmem>>, vector<3x16xf32>,
    } else {
    }
    return
  }
  func.func @transform_0(%arg0: i32, %arg1: i32, %arg2: memref<3xi32, #tpu.memory_space<smem>>) -> (i32, i32, i32) {
    %c0_i32 = arith.constant 0 : i32
    %c0_i32_0 = arith.constant 0 : i32
    %c0_i32_1 = arith.constant 0 : i32
    %c0_i32_2 = arith.constant 0 : i32
    return %c0_i32, %c0_i32_0, %c0_i32_1 : i32, i32, i32
  }
  func.func @transform_1(%arg0: i32, %arg1: i32, %arg2: memref<3xi32, #tpu.memory_space<smem>>) -> (i32, i32, i32, i32) {
    %c0_i32 = arith.constant 0 : i32
    %c0_i32_0 = arith.constant 0 : i32
    %c0_i32_1 = arith.constant 0 : i32
    return %arg1, %c0_i32, %c0_i32_0, %arg0 : i32, i32, i32, i32
  }
  func.func @transform_2(%arg0: i32, %arg1: i32, %arg2: memref<3xi32, #tpu.memory_space<smem>>) -> (i32, i32) {
    %c0_i32 = arith.constant 0 : i32
    %c0_i32_0 = arith.constant 0 : i32
    return %c0_i32, %arg0 : i32, i32
  }
}

</mosaic_0001>

<llo_original>
// kernel: resnet_roi_head_forward.3
$region0: #{resnet_roi_head_forward.3}
  #allocation0 [shape = 'u32[]', space=smem, size = 0x4, offset = 0x4, fixed_abs, tag = 'smem constant byte address 0x4 - core index']
  #allocation1 [shape = 'u32[144,128]{1,0:T(1,128)}', space=vmem, size = 0x12000, scoped, tag = 'internal scratch']
  #allocation2 [shape = 'f32[2,64,8]{2,1,0:T(8,128)}', space=vmem, size = 0x10000, scoped, tag = 'scratch operand']
  #allocation3 [shape = 'bf16[3,64,8]{2,1,0:T(16,128)(2,1)}', space=vmem, size = 0xc000, scoped, tag = 'scratch operand']
  #allocation4 [shape = 's32[1]{0}', space=sflag, size = 0x4, scoped, tag = 'scoped memory for resnet_roi_head_forward.3']
  #allocation5 [shape = 'u8[512]{0}', space=smem, size = 0x200, scoped, tag = 'prefetched SMEM operand 0']
  %s0 = inlined_call_operand.vmem [shape: s32[3], index: 0, kind: input, shape index: {}]
  %s1 = inlined_call_operand.vmem [shape: bf16[3,16,64], index: 1, kind: input, shape index: {}]
  %s2 = inlined_call_operand.vmem [shape: f32[8,2,64,8], index: 2, kind: input, shape index: {}]
  %s3 = inlined_call_operand.vmem [shape: f32[3,8], index: 3, kind: output, shape index: {}]
  %s4 = sld [smem:[#allocation0]]
  $region49: #{resnet_roi_head_forward.3} parent=0
    _
  %s6 = ssub.s32 1, %s4
  %s7 = scalar_select 0, %s6, %s4
  %s8 = sshll.u32 %s0, 4
  %s9 = int_to_ptr.vmem [resolvable:$true] %s8
  %11 = dma.vmem_to_smem %s9, 16, [#allocation5], [#allocation4]
  %12 = dma.done [#allocation4], 16
  %13 = sfence
  loop: start=0, step=1, limit=10
  $region2: #{resnet_roi_head_forward.3} parent=0 // loop_pre_header
    _
  $region3: #{resnet_roi_head_forward.3} parent=0 // loop_header
    %s15 = sphi 0, %s19
    %p16 = scmp.ge.s32.totalorder %s15, 10
    %s22 = sphi 0, %s34
    %s23 = sphi 0, %s30
    %s24 = sphi 0, %s22
    %s25 = sphi 0, %s23
    %s26 = sphi 0, %s24
    %s27 = sphi 0, %s25
    %s35 = sphi 0, %s35
    %s37 = sphi 0, %s35
    %s38 = sphi 0, %s37
    %s52 = sphi 0, %s38
    %s60 = sphi 0, %s62
    %s63 = sphi 0, %s60
    %s64 = sphi 0, %s63
    %s80 = sphi 0, %s64
    %s86 = sphi 0, %s88
    %s89 = sphi 0, %s86
    %s90 = sphi 0, %s89
    %s106 = sphi 0, %s90
  $region4: #{resnet_roi_head_forward.3} parent=0 // loop_header_branch
    %18 = sbr.rel (%p16) target = $region8
  $region5: #{resnet_roi_head_forward.3} parent=0 // loop_body
    %s20 = ssub.s32 %s15, 1
    %s21 = ssub.s32 %s15, 2
    %s28 = sadd.s32 1, %s23
    %p29 = scmp.ge.s32.totalorder %s28, 8
    %s30 = scalar_select %p29, 0, %s28
    %s31 = sadd.s32 1, %s22
    %s32 = scalar_select %p29, %s31, %s22
    %p33 = scmp.ge.s32.totalorder %s32, 1
    %s34 = scalar_select %p33, 0, %s32
    %s36 = sadd.s32 %s35, 1
    %p39 = scmp.eq.s32.totalorder %s15, 7
    %p40 = scmp.ne.s32.totalorder %s35, %s37
    %p41 = scmp.eq.s32.totalorder %s15, 0
    %p42 = por %p40, %p41
    %p43 = scmp.ne.s32.totalorder %s35, %s37
    %p44 = scmp.eq.s32.totalorder %s20, 7
    %p45 = por %p43, %p44
    %p46 = scmp.ne.s32.totalorder %s37, %s38
    %p47 = scmp.eq.s32.totalorder %s20, 0
    %p48 = por %p46, %p47
    %p49 = scmp.ne.s32.totalorder %s37, %s38
    %p50 = scmp.eq.s32.totalorder %s21, 7
    %p51 = por %p49, %p50
    %p53 = scmp.ne.s32.totalorder %s38, %s52
    %p54 = scmp.eq.s32.totalorder %s21, 0
    %p55 = por %p53, %p54
    %s56 = ssub.s32 %s23, %s30
    %s57 = ssub.s32 %s22, %s34
    %s58 = sor.u32 %s56, %s57
    %p59 = scmp.eq.s32.totalorder %s58, 0
    %s61 = sadd.s32 %s60, 1
    %s62 = scalar_select %p59, %s60, %s61
    %p65 = pneg %p59
    %p66 = scmp.eq.s32.totalorder %s15, 7
    %p67 = por %p65, %p66
    %p68 = scmp.ne.s32.totalorder %s60, %s63
    %p69 = scmp.eq.s32.totalorder %s15, 0
    %p70 = por %p68, %p69
    %p71 = scmp.ne.s32.totalorder %s60, %s63
    %p72 = scmp.eq.s32.totalorder %s20, 7
    %p73 = por %p71, %p72
    %p74 = scmp.ne.s32.totalorder %s63, %s64
    %p75 = scmp.eq.s32.totalorder %s20, 0
    %p76 = por %p74, %p75
    %p77 = scmp.ne.s32.totalorder %s63, %s64
    %p78 = scmp.eq.s32.totalorder %s21, 7
    %p79 = por %p77, %p78
    %p81 = scmp.ne.s32.totalorder %s64, %s80
    %p82 = scmp.eq.s32.totalorder %s21, 0
    %p83 = por %p81, %p82
    %s84 = ssub.s32 %s22, %s34
    %p85 = scmp.eq.s32.totalorder %s84, 0
    %s87 = sadd.s32 %s86, 1
    %s88 = scalar_select %p85, %s86, %s87
    %p91 = pneg %p85
    %p92 = scmp.eq.s32.totalorder %s15, 7
    %p93 = por %p91, %p92
    %p94 = scmp.ne.s32.totalorder %s86, %s89
    %p95 = scmp.eq.s32.totalorder %s15, 0
    %p96 = por %p94, %p95
    %p97 = scmp.ne.s32.totalorder %s86, %s89
    %p98 = scmp.eq.s32.totalorder %s20, 7
    %p99 = por %p97, %p98
    %p100 = scmp.ne.s32.totalorder %s89, %s90
    %p101 = scmp.eq.s32.totalorder %s20, 0
    %p102 = por %p100, %p101
    %p103 = scmp.ne.s32.totalorder %s89, %s90
    %p104 = scmp.eq.s32.totalorder %s21, 7
    %p105 = por %p103, %p104
    %p107 = scmp.ne.s32.totalorder %s90, %s106
    %p108 = scmp.eq.s32.totalorder %s21, 0
    %p109 = por %p107, %p108
    %p110 = scmp.le.s32.totalorder 1, %s15
    %p111 = scmp.lt.s32.totalorder %s15, 9
    %p112 = pnand %p110, %p111
    %p113 = pneg %p112
    // Predicated region
    $region9: #{resnet_roi_head_forward.3} parent=5 // pred_check
      _
    $region10: #{resnet_roi_head_forward.3} parent=5 // pred_check_branch
      %115 = sbr.rel (%p112) target = $region12
    $region11: #{resnet_roi_head_forward.3} parent=5 // pred_region
      %s116 = ssub.s32 %s15, 1
      // Predicated region
      $region13: #{resnet_roi_head_forward.3} parent=11 // pred_check
        %p117 = pneg %p48
      $region14: #{resnet_roi_head_forward.3} parent=11 // pred_check_branch
        %119 = sbr.rel (%p117) target = $region16
      $region15: #{resnet_roi_head_forward.3} parent=11 // pred_region
        _
      $region16: #{resnet_roi_head_forward.3} parent=11 // pred_fallthru
        _
    $region12: #{resnet_roi_head_forward.3} parent=5 // pred_fallthru
      _
    %p120 = scmp.lt.s32.totalorder %s15, 8
    // Predicated region
    $region17: #{resnet_roi_head_forward.3} parent=5 // pred_check
      %p121 = pneg %p120
    $region18: #{resnet_roi_head_forward.3} parent=5 // pred_check_branch
      %123 = sbr.rel (%p121) target = $region20
    $region19: #{resnet_roi_head_forward.3} parent=5 // pred_region
      // Predicated region
      $region21: #{resnet_roi_head_forward.3} parent=19 // pred_check
        %p124 = pneg %p70
      $region22: #{resnet_roi_head_forward.3} parent=19 // pred_check_branch
        %126 = sbr.rel (%p124) target = $region24
      $region23: #{resnet_roi_head_forward.3} parent=19 // pred_region
        %p127 = scmp.lt.s32.totalorder %s23, 7
        %s128 = scalar_select %p127, %s23, 7
        %p129 = scmp.lt.s32.totalorder %s22, 0
        %s130 = scalar_select %p129, %s22, 0
        %s131 = smul.addr %s128, 16
        %s132 = sadd.s32 %s130, %s131
        %s133 = smul.addr %s132, 8
        %s134 = scalar_lea.vmem %s2, %s133
      $region24: #{resnet_roi_head_forward.3} parent=19 // pred_fallthru
        _
    $region20: #{resnet_roi_head_forward.3} parent=5 // pred_fallthru
      _
    %p135 = scmp.le.s32.totalorder 1, %s15
    %p136 = scmp.lt.s32.totalorder %s15, 9
    %p137 = pnand %p135, %p136
    %p138 = pneg %p137
    // Predicated region
    $region25: #{resnet_roi_head_forward.3} parent=5 // pred_check
      _
    $region26: #{resnet_roi_head_forward.3} parent=5 // pred_check_branch
      %140 = sbr.rel (%p137) target = $region28
    $region27: #{resnet_roi_head_forward.3} parent=5 // pred_region
      %s141 = ssub.s32 %s15, 1
      %p142 = pneg %p48
      %p143 = pneg %p45
      %p144 = scmp.lt.s32.totalorder %s25, 7
      %s145 = scalar_select %p144, %s25, 7
      %p146 = scmp.lt.s32.totalorder %s24, 0
      %s147 = scalar_select %p146, %s24, 0
      %s148 = smul.addr %s145, 16
      %s149 = sadd.s32 %s147, %s148
      %s150 = smul.addr %s149, 8
      %s151 = scalar_lea.vmem %s2, %s150
      %p152 = pneg %p76
      %p153 = pneg %p73
      %p154 = pneg %p102
      %p155 = pneg %p99
      %p156 = scmp.lt.s32.totalorder %s24, 0
      %s157 = scalar_select %p156, %s24, 0
      %s158 = smul.addr %s157, 4
      %s159 = scalar_lea.vmem %s3, %s158
      %p160 = scmp.lt.s32.totalorder %s25, 7
      %s161 = scalar_select %p160, %s25, 7
      %p162 = scmp.lt.s32.totalorder %s24, 0
      %s163 = scalar_select %p162, %s24, 0
      %s164 = smul.addr %s161, 16
      %s165 = sadd.s32 %s163, %s164
      %s166 = smul.addr %s165, 8
      %s167 = scalar_lea.vmem %s2, %s166
      %p168 = scmp.lt.s32.totalorder %s24, 0
      %s169 = scalar_select %p168, %s24, 0
      %s170 = smul.addr %s169, 4
      %s171 = scalar_lea.vmem %s3, %s170
      %p173 = scmp.eq.s32.totalorder %s25, 0
      // Predicated region
      $region29: #{resnet_roi_head_forward.3} parent=27 // pred_check
        %p174 = pneg %p173
      $region30: #{resnet_roi_head_forward.3} parent=27 // pred_check_branch
        %176 = sbr.rel (%p174) target = $region32
      $region31: #{resnet_roi_head_forward.3} parent=27 // pred_region
        %vm177 = vcmask 64512
        %178 = vst.msk [vmem:[#allocation2] sm:$0xff] %vm177, 0.0
        %179 = vst.msk [vmem:[#allocation2 + $0x8] sm:$0xff] %vm177, 0.0
        %180 = vst.msk [vmem:[#allocation2 + $0x10] sm:$0xff] %vm177, 0.0
        %181 = vst.msk [vmem:[#allocation2 + $0x18] sm:$0xff] %vm177, 0.0
        %182 = vst.msk [vmem:[#allocation2 + $0x20] sm:$0xff] %vm177, 0.0
        %183 = vst.msk [vmem:[#allocation2 + $0x28] sm:$0xff] %vm177, 0.0
        %184 = vst.msk [vmem:[#allocation2 + $0x30] sm:$0xff] %vm177, 0.0
        %185 = vst.msk [vmem:[#allocation2 + $0x38] sm:$0xff] %vm177, 0.0
        %186 = vst.msk [vmem:[#allocation2 + $0x40] sm:$0xff] %vm177, 0.0
        %187 = vst.msk [vmem:[#allocation2 + $0x48] sm:$0xff] %vm177, 0.0
        %188 = vst.msk [vmem:[#allocation2 + $0x50] sm:$0xff] %vm177, 0.0
        %189 = vst.msk [vmem:[#allocation2 + $0x58] sm:$0xff] %vm177, 0.0
        %190 = vst.msk [vmem:[#allocation2 + $0x60] sm:$0xff] %vm177, 0.0
        %191 = vst.msk [vmem:[#allocation2 + $0x68] sm:$0xff] %vm177, 0.0
        %192 = vst.msk [vmem:[#allocation2 + $0x70] sm:$0xff] %vm177, 0.0
        %193 = vst.msk [vmem:[#allocation2 + $0x78] sm:$0xff] %vm177, 0.0
      $region32: #{resnet_roi_head_forward.3} parent=27 // pred_fallthru
        _
      %v194 = vld [vmem:[#allocation2] sm:$0xff]
      %v195 = vld [vmem:[#allocation2 + $0x8] sm:$0xff]
      %v196 = vld [vmem:[#allocation2 + $0x10] sm:$0xff]
      %v197 = vld [vmem:[#allocation2 + $0x18] sm:$0xff]
      %v198 = vld [vmem:[#allocation2 + $0x20] sm:$0xff]
      %v199 = vld [vmem:[#allocation2 + $0x28] sm:$0xff]
      %v200 = vld [vmem:[#allocation2 + $0x30] sm:$0xff]
      %v201 = vld [vmem:[#allocation2 + $0x38] sm:$0xff]
      %v202 = vld [vmem:[#allocation2 + $0x40] sm:$0xff]
      %v203 = vld [vmem:[#allocation2 + $0x48] sm:$0xff]
      %v204 = vld [vmem:[#allocation2 + $0x50] sm:$0xff]
      %v205 = vld [vmem:[#allocation2 + $0x58] sm:$0xff]
      %v206 = vld [vmem:[#allocation2 + $0x60] sm:$0xff]
      %v207 = vld [vmem:[#allocation2 + $0x68] sm:$0xff]
      %v208 = vld [vmem:[#allocation2 + $0x70] sm:$0xff]
      %v209 = vld [vmem:[#allocation2 + $0x78] sm:$0xff]
      %v210 = vld [vmem:[%s167] sm:$0xff]
      %v211 = vld [vmem:[%s167 + $0x8] sm:$0xff]
      %v212 = vld [vmem:[%s167 + $0x10] sm:$0xff]
      %v213 = vld [vmem:[%s167 + $0x18] sm:$0xff]
      %v214 = vld [vmem:[%s167 + $0x20] sm:$0xff]
      %v215 = vld [vmem:[%s167 + $0x28] sm:$0xff]
      %v216 = vld [vmem:[%s167 + $0x30] sm:$0xff]
      %v217 = vld [vmem:[%s167 + $0x38] sm:$0xff]
      %v218 = vld [vmem:[%s167 + $0x40] sm:$0xff]
      %v219 = vld [vmem:[%s167 + $0x48] sm:$0xff]
      %v220 = vld [vmem:[%s167 + $0x50] sm:$0xff]
      %v221 = vld [vmem:[%s167 + $0x58] sm:$0xff]
      %v222 = vld [vmem:[%s167 + $0x60] sm:$0xff]
      %v223 = vld [vmem:[%s167 + $0x68] sm:$0xff]
      %v224 = vld [vmem:[%s167 + $0x70] sm:$0xff]
      %v225 = vld [vmem:[%s167 + $0x78] sm:$0xff]
      %v226 = vadd.f32 %v194, %v210
      %v227 = vadd.f32 %v195, %v211
      %v228 = vadd.f32 %v196, %v212
      %v229 = vadd.f32 %v197, %v213
      %v230 = vadd.f32 %v198, %v214
      %v231 = vadd.f32 %v199, %v215
      %v232 = vadd.f32 %v200, %v216
      %v233 = vadd.f32 %v201, %v217
      %v234 = vadd.f32 %v202, %v218
      %v235 = vadd.f32 %v203, %v219
      %v236 = vadd.f32 %v204, %v220
      %v237 = vadd.f32 %v205, %v221
      %v238 = vadd.f32 %v206, %v222
      %v239 = vadd.f32 %v207, %v223
      %v240 = vadd.f32 %v208, %v224
      %v241 = vadd.f32 %v209, %v225
      %vm242 = vcmask 64512
      %243 = vst.msk [vmem:[#allocation2] sm:$0xff] %vm242, %v226
      %244 = vst.msk [vmem:[#allocation2 + $0x8] sm:$0xff] %vm242, %v227
      %245 = vst.msk [vmem:[#allocation2 + $0x10] sm:$0xff] %vm242, %v228
      %246 = vst.msk [vmem:[#allocation2 + $0x18] sm:$0xff] %vm242, %v229
      %247 = vst.msk [vmem:[#allocation2 + $0x20] sm:$0xff] %vm242, %v230
      %248 = vst.msk [vmem:[#allocation2 + $0x28] sm:$0xff] %vm242, %v231
      %249 = vst.msk [vmem:[#allocation2 + $0x30] sm:$0xff] %vm242, %v232
      %250 = vst.msk [vmem:[#allocation2 + $0x38] sm:$0xff] %vm242, %v233
      %251 = vst.msk [vmem:[#allocation2 + $0x40] sm:$0xff] %vm242, %v234
      %252 = vst.msk [vmem:[#allocation2 + $0x48] sm:$0xff] %vm242, %v235
      %253 = vst.msk [vmem:[#allocation2 + $0x50] sm:$0xff] %vm242, %v236
      %254 = vst.msk [vmem:[#allocation2 + $0x58] sm:$0xff] %vm242, %v237
      %255 = vst.msk [vmem:[#allocation2 + $0x60] sm:$0xff] %vm242, %v238
      %256 = vst.msk [vmem:[#allocation2 + $0x68] sm:$0xff] %vm242, %v239
      %257 = vst.msk [vmem:[#allocation2 + $0x70] sm:$0xff] %vm242, %v240
      %258 = vst.msk [vmem:[#allocation2 + $0x78] sm:$0xff] %vm242, %v241
      %p259 = scmp.eq.s32.totalorder %s25, 7
      // Predicated region
      $region33: #{resnet_roi_head_forward.3} parent=27 // pred_check
        %p260 = pneg %p259
      $region34: #{resnet_roi_head_forward.3} parent=27 // pred_check_branch
        %262 = sbr.rel (%p260) target = $region36
      $region35: #{resnet_roi_head_forward.3} parent=27 // pred_region
        %s263 = sld [smem:[#allocation5]]
        %s264 = smul.u32 %s263, 64
        %s265 = scalar_lea.vmem [#allocation2], %s264
        %v266 = vld [vmem:[%s265] sm:$0xff]
        %v267 = vld [vmem:[%s265 + $0x8] sm:$0xff]
        %v268 = vld [vmem:[%s265 + $0x10] sm:$0xff]
        %v269 = vld [vmem:[%s265 + $0x18] sm:$0xff]
        %v270 = vld [vmem:[%s265 + $0x20] sm:$0xff]
        %v271 = vld [vmem:[%s265 + $0x28] sm:$0xff]
        %v272 = vld [vmem:[%s265 + $0x30] sm:$0xff]
        %v273 = vld [vmem:[%s265 + $0x38] sm:$0xff]
        %v274 = vmul.f32 %v266, 0.125
        %v275 = vmul.f32 %v267, 0.125
        %v276 = vmul.f32 %v268, 0.125
        %v277 = vmul.f32 %v269, 0.125
        %v278 = vmul.f32 %v270, 0.125
        %v279 = vmul.f32 %v271, 0.125
        %v280 = vmul.f32 %v272, 0.125
        %v281 = vmul.f32 %v273, 0.125
        %v282 = vpack.c.bf16 %v275, %v274
        %v283 = vpack.c.bf16 %v277, %v276
        %v284 = vpack.c.bf16 %v279, %v278
        %v285 = vpack.c.bf16 %v281, %v280
        %286 = vst.msk [vmem:[#allocation3] sm:$0xff] %vm242, %v282
        %287 = vst.msk [vmem:[#allocation3 + $0x8] sm:$0xff] %vm242, %v283
        %288 = vst.msk [vmem:[#allocation3 + $0x10] sm:$0xff] %vm242, %v284
        %289 = vst.msk [vmem:[#allocation3 + $0x18] sm:$0xff] %vm242, %v285
        %s290 = sld [smem:[#allocation5 + $0x1]]
        %s291 = smul.u32 %s290, 64
        %s292 = scalar_lea.vmem [#allocation2], %s291
        %v293 = vld [vmem:[%s292] sm:$0xff]
        %v294 = vld [vmem:[%s292 + $0x8] sm:$0xff]
        %v295 = vld [vmem:[%s292 + $0x10] sm:$0xff]
        %v296 = vld [vmem:[%s292 + $0x18] sm:$0xff]
        %v297 = vld [vmem:[%s292 + $0x20] sm:$0xff]
        %v298 = vld [vmem:[%s292 + $0x28] sm:$0xff]
        %v299 = vld [vmem:[%s292 + $0x30] sm:$0xff]
        %v300 = vld [vmem:[%s292 + $0x38] sm:$0xff]
        %v301 = vmul.f32 %v293, 0.125
        %v302 = vmul.f32 %v294, 0.125
        %v303 = vmul.f32 %v295, 0.125
        %v304 = vmul.f32 %v296, 0.125
        %v305 = vmul.f32 %v297, 0.125
        %v306 = vmul.f32 %v298, 0.125
        %v307 = vmul.f32 %v299, 0.125
        %v308 = vmul.f32 %v300, 0.125
        %v309 = vpack.c.bf16 %v302, %v301
        %v310 = vpack.c.bf16 %v304, %v303
        %v311 = vpack.c.bf16 %v306, %v305
        %v312 = vpack.c.bf16 %v308, %v307
        %s313 = scalar_lea.vmem [#allocation3], 32
        %314 = vst.msk [vmem:[%s313] sm:$0xff] %vm242, %v309
        %315 = vst.msk [vmem:[%s313 + $0x8] sm:$0xff] %vm242, %v310
        %316 = vst.msk [vmem:[%s313 + $0x10] sm:$0xff] %vm242, %v311
        %317 = vst.msk [vmem:[%s313 + $0x18] sm:$0xff] %vm242, %v312
        %s318 = sld [smem:[#allocation5 + $0x2]]
        %s319 = smul.u32 %s318, 64
        %s320 = scalar_lea.vmem [#allocation2], %s319
        %v321 = vld [vmem:[%s320] sm:$0xff]
        %v322 = vld [vmem:[%s320 + $0x8] sm:$0xff]
        %v323 = vld [vmem:[%s320 + $0x10] sm:$0xff]
        %v324 = vld [vmem:[%s320 + $0x18] sm:$0xff]
        %v325 = vld [vmem:[%s320 + $0x20] sm:$0xff]
        %v326 = vld [vmem:[%s320 + $0x28] sm:$0xff]
        %v327 = vld [vmem:[%s320 + $0x30] sm:$0xff]
        %v328 = vld [vmem:[%s320 + $0x38] sm:$0xff]
        %v329 = vmul.f32 %v321, 0.125
        %v330 = vmul.f32 %v322, 0.125
        %v331 = vmul.f32 %v323, 0.125
        %v332 = vmul.f32 %v324, 0.125
        %v333 = vmul.f32 %v325, 0.125
        %v334 = vmul.f32 %v326, 0.125
        %v335 = vmul.f32 %v327, 0.125
        %v336 = vmul.f32 %v328, 0.125
        %v337 = vpack.c.bf16 %v330, %v329
        %v338 = vpack.c.bf16 %v332, %v331
        %v339 = vpack.c.bf16 %v334, %v333
        %v340 = vpack.c.bf16 %v336, %v335
        %s341 = scalar_lea.vmem [#allocation3], 64
        %342 = vst.msk [vmem:[%s341] sm:$0xff] %vm242, %v337
        %343 = vst.msk [vmem:[%s341 + $0x8] sm:$0xff] %vm242, %v338
        %344 = vst.msk [vmem:[%s341 + $0x10] sm:$0xff] %vm242, %v339
        %345 = vst.msk [vmem:[%s341 + $0x18] sm:$0xff] %vm242, %v340
        %v346 = vld [vmem:[%s1] sm:$0xf]
        %v347 = vld [vmem:[%s1 + $0x4] sm:$0xf]
        %v348 = vld [vmem:[%s1 + $0x8] sm:$0xf]
        %v349 = vld [vmem:[%s1 + $0xc] sm:$0xf]
        %v350 = vld [vmem:[%s1 + $0x10] sm:$0xf]
        %v351 = vld [vmem:[%s1 + $0x14] sm:$0xf]
        %v352 = vld [vmem:[#allocation3] sm:$0xff]
        %v353 = vld [vmem:[#allocation3 + $0x8] sm:$0xff]
        %v354 = vld [vmem:[#allocation3 + $0x10] sm:$0xff]
        %v355 = vld [vmem:[#allocation3 + $0x18] sm:$0xff]
        %v356 = vld [vmem:[#allocation3 + $0x20] sm:$0xff]
        %v357 = vld [vmem:[#allocation3 + $0x28] sm:$0xff]
        %v358 = vld [vmem:[#allocation3 + $0x30] sm:$0xff]
        %v359 = vld [vmem:[#allocation3 + $0x38] sm:$0xff]
        %v360 = vld [vmem:[#allocation3 + $0x40] sm:$0xff]
        %v361 = vld [vmem:[#allocation3 + $0x48] sm:$0xff]
        %v362 = vld [vmem:[#allocation3 + $0x50] sm:$0xff]
        %v363 = vld [vmem:[#allocation3 + $0x58] sm:$0xff]
        %v366 = vunpack.c.l.b16 %v346
        %v367 = vunpack.c.l.b16 %v347
        %v368 = vpack.c.b16 %v367, %v366
        %vm369 = vcmask 523264
        %v371 = vsel %vm369, %v368, 0
        %373 = vmatprep.subr.bf16.mxu0 0
        %374 = vmatpush1.bf16.msra.mxu0 %v352
        %375 = vmatprep.subr.bf16.mxu0 0
        %376 = vmatpush1.bf16.msra.mxu0 %v353
        %377 = vmatprep.subr.bf16.mxu0 0
        %378 = vmatpush1.bf16.msra.mxu0 %v354
        %379 = vmatprep.subr.bf16.mxu0 0
        %380 = vmatpush1.bf16.msra.mxu0 %v355
        %381 = vmatprep.subr.bf16.mxu0 0
        %382 = vmatpush1.bf16.msra.mxu0 0
        %383 = vmatprep.subr.bf16.mxu0 0
        %384 = vmatpush1.bf16.msra.mxu0 0
        %385 = vmatprep.subr.bf16.mxu0 0
        %386 = vmatpush1.bf16.msra.mxu0 0
        %387 = vmatprep.subr.bf16.mxu0 0
        %388 = vmatpush1.bf16.msra.mxu0 0
        %389 = vmatprep.subr.bf16.mxu0 0
        %390 = vmatpush1.bf16.msra.mxu0 0
        %391 = vmatprep.subr.bf16.mxu0 0
        %392 = vmatpush1.bf16.msra.mxu0 0
        %393 = vmatprep.subr.bf16.mxu0 0
        %394 = vmatpush1.bf16.msra.mxu0 0
        %395 = vmatprep.subr.bf16.mxu0 0
        %396 = vmatpush1.bf16.msra.mxu0 0
        %397 = vmatprep.subr.bf16.mxu0 0
        %398 = vmatpush1.bf16.msra.mxu0 0
        %399 = vmatprep.subr.bf16.mxu0 0
        %400 = vmatpush1.bf16.msra.mxu0 0
        %401 = vmatprep.subr.bf16.mxu0 0
        %402 = vmatpush1.bf16.msra.mxu0 0
        %403 = vmatprep.subr.bf16.mxu0 0
        %404 = vmatpush1.bf16.msra.mxu0 0
        %405 = vmatprep.mubr.bf16.mxu0 0
        %406 = vmatmul.mubr.bf16.gmra.mrb[0].mxu0 %v371
        %v407 = vpop.f32.mrb[0].mxu0
        %v408 = vadd.f32 0.0, %v407
        %v409 = vpop.f32.mrb[0].mxu0
        %v410 = vpop.f32.mrb[0].mxu0
        %v411 = vadd.f32 0.0, %v410
        %v412 = vpop.f32.mrb[0].mxu0
        %413 = vdwg.mxu0
        %v416 = vunpack.c.l.b16 %v348
        %v417 = vunpack.c.l.b16 %v349
        %v418 = vpack.c.b16 %v417, %v416
        %v420 = vsel %vm369, %v418, 0
        %422 = vmatprep.subr.bf16.mxu0 0
        %423 = vmatpush1.bf16.msra.mxu0 %v356
        %424 = vmatprep.subr.bf16.mxu0 0
        %425 = vmatpush1.bf16.msra.mxu0 %v357
        %426 = vmatprep.subr.bf16.mxu0 0
        %427 = vmatpush1.bf16.msra.mxu0 %v358
        %428 = vmatprep.subr.bf16.mxu0 0
        %429 = vmatpush1.bf16.msra.mxu0 %v359
        %430 = vmatprep.subr.bf16.mxu0 0
        %431 = vmatpush1.bf16.msra.mxu0 0
        %432 = vmatprep.subr.bf16.mxu0 0
        %433 = vmatpush1.bf16.msra.mxu0 0
        %434 = vmatprep.subr.bf16.mxu0 0
        %435 = vmatpush1.bf16.msra.mxu0 0
        %436 = vmatprep.subr.bf16.mxu0 0
        %437 = vmatpush1.bf16.msra.mxu0 0
        %438 = vmatprep.subr.bf16.mxu0 0
        %439 = vmatpush1.bf16.msra.mxu0 0
        %440 = vmatprep.subr.bf16.mxu0 0
        %441 = vmatpush1.bf16.msra.mxu0 0
        %442 = vmatprep.subr.bf16.mxu0 0
        %443 = vmatpush1.bf16.msra.mxu0 0
        %444 = vmatprep.subr.bf16.mxu0 0
        %445 = vmatpush1.bf16.msra.mxu0 0
        %446 = vmatprep.subr.bf16.mxu0 0
        %447 = vmatpush1.bf16.msra.mxu0 0
        %448 = vmatprep.subr.bf16.mxu0 0
        %449 = vmatpush1.bf16.msra.mxu0 0
        %450 = vmatprep.subr.bf16.mxu0 0
        %451 = vmatpush1.bf16.msra.mxu0 0
        %452 = vmatprep.subr.bf16.mxu0 0
        %453 = vmatpush1.bf16.msra.mxu0 0
        %454 = vmatprep.mubr.bf16.mxu0 0
        %455 = vmatmul.mubr.bf16.gmra.mrb[0].mxu0 %v420
        %v456 = vpop.f32.mrb[0].mxu0
        %v457 = vadd.f32 0.0, %v456
        %v458 = vpop.f32.mrb[0].mxu0
        %v459 = vpop.f32.mrb[0].mxu0
        %v460 = vadd.f32 0.0, %v459
        %v461 = vpop.f32.mrb[0].mxu0
        %462 = vdwg.mxu0
        %v465 = vunpack.c.l.b16 %v350
        %v466 = vunpack.c.l.b16 %v351
        %v467 = vpack.c.b16 %v466, %v465
        %v469 = vsel %vm369, %v467, 0
        %471 = vmatprep.subr.bf16.mxu0 0
        %472 = vmatpush1.bf16.msra.mxu0 %v360
        %473 = vmatprep.subr.bf16.mxu0 0
        %474 = vmatpush1.bf16.msra.mxu0 %v361
        %475 = vmatprep.subr.bf16.mxu0 0
        %476 = vmatpush1.bf16.msra.mxu0 %v362
        %477 = vmatprep.subr.bf16.mxu0 0
        %478 = vmatpush1.bf16.msra.mxu0 %v363
        %479 = vmatprep.subr.bf16.mxu0 0
        %480 = vmatpush1.bf16.msra.mxu0 0
        %481 = vmatprep.subr.bf16.mxu0 0
        %482 = vmatpush1.bf16.msra.mxu0 0
        %483 = vmatprep.subr.bf16.mxu0 0
        %484 = vmatpush1.bf16.msra.mxu0 0
        %485 = vmatprep.subr.bf16.mxu0 0
        %486 = vmatpush1.bf16.msra.mxu0 0
        %487 = vmatprep.subr.bf16.mxu0 0
        %488 = vmatpush1.bf16.msra.mxu0 0
        %489 = vmatprep.subr.bf16.mxu0 0
        %490 = vmatpush1.bf16.msra.mxu0 0
        %491 = vmatprep.subr.bf16.mxu0 0
        %492 = vmatpush1.bf16.msra.mxu0 0
        %493 = vmatprep.subr.bf16.mxu0 0
        %494 = vmatpush1.bf16.msra.mxu0 0
        %495 = vmatprep.subr.bf16.mxu0 0
        %496 = vmatpush1.bf16.msra.mxu0 0
        %497 = vmatprep.subr.bf16.mxu0 0
        %498 = vmatpush1.bf16.msra.mxu0 0
        %499 = vmatprep.subr.bf16.mxu0 0
        %500 = vmatpush1.bf16.msra.mxu0 0
        %501 = vmatprep.subr.bf16.mxu0 0
        %502 = vmatpush1.bf16.msra.mxu0 0
        %503 = vmatprep.mubr.bf16.mxu0 0
        %504 = vmatmul.mubr.bf16.gmra.mrb[0].mxu0 %v469
        %v505 = vpop.f32.mrb[0].mxu0
        %v506 = vadd.f32 0.0, %v505
        %v507 = vpop.f32.mrb[0].mxu0
        %v508 = vpop.f32.mrb[0].mxu0
        %v509 = vadd.f32 0.0, %v508
        %v510 = vpop.f32.mrb[0].mxu0
        %511 = vdwg.mxu0
        %v512 = vsel %vm242, %v408, -inf
        %v513 = vsel %vm242, %v411, -inf
        %v514 = vmax.f32 %v512, %v513
        %v515 = vrot.slane %v514, 4
        %v516 = vmax.f32 %v514, %v515
        %v517 = vrot.slane %v516, 2
        %v518 = vmax.f32 %v516, %v517
        %v519 = vrot.slane %v518, 1
        %v520 = vmax.f32 %v518, %v519
        %v521 = vsel %vm242, %v457, -inf
        %v522 = vsel %vm242, %v460, -inf
        %v523 = vmax.f32 %v521, %v522
        %v524 = vrot.slane %v523, 4
        %v525 = vmax.f32 %v523, %v524
        %v526 = vrot.slane %v525, 2
        %v527 = vmax.f32 %v525, %v526
        %v528 = vrot.slane %v527, 1
        %v529 = vmax.f32 %v527, %v528
        %v530 = vsel %vm242, %v506, -inf
        %v531 = vsel %vm242, %v509, -inf
        %v532 = vmax.f32 %v530, %v531
        %v533 = vrot.slane %v532, 4
        %v534 = vmax.f32 %v532, %v533
        %v535 = vrot.slane %v534, 2
        %v536 = vmax.f32 %v534, %v535
        %v537 = vrot.slane %v536, 1
        %v538 = vmax.f32 %v536, %v537
        %vm542 = vcmask 1041409
        %v543 = vsel %vm542, %v529, %v520
        %vm544 = vcmask 1042434
        %v545 = vsel %vm544, %v538, %v543
        %vm547 = vcmask 59392
        %548 = vst.msk [vmem:[%s171] sm:$0x7] %vm547, %v545
      $region36: #{resnet_roi_head_forward.3} parent=27 // pred_fallthru
        _
      %p549 = scmp.lt.s32.totalorder %s24, 0
      %s550 = scalar_select %p549, %s24, 0
      %s551 = smul.addr %s550, 4
      %s552 = scalar_lea.vmem %s3, %s551
      // Predicated region
      $region37: #{resnet_roi_head_forward.3} parent=27 // pred_check
        %p553 = pneg %p99
      $region38: #{resnet_roi_head_forward.3} parent=27 // pred_check_branch
        %555 = sbr.rel (%p553) target = $region40
      $region39: #{resnet_roi_head_forward.3} parent=27 // pred_region
        _
      $region40: #{resnet_roi_head_forward.3} parent=27 // pred_fallthru
        _
      // Predicated region
      $region41: #{resnet_roi_head_forward.3} parent=27 // pred_check
        %p556 = pneg %p99
      $region42: #{resnet_roi_head_forward.3} parent=27 // pred_check_branch
        %558 = sbr.rel (%p556) target = $region44
      $region43: #{resnet_roi_head_forward.3} parent=27 // pred_region
        %p559 = scmp.lt.s32.totalorder %s24, 0
        %s560 = scalar_select %p559, %s24, 0
        %s561 = smul.addr %s560, 4
        %s562 = scalar_lea.vmem %s3, %s561
      $region44: #{resnet_roi_head_forward.3} parent=27 // pred_fallthru
        _
    $region28: #{resnet_roi_head_forward.3} parent=5 // pred_fallthru
      _
    %p563 = scmp.le.s32.totalorder 2, %s15
    // Predicated region
    $region45: #{resnet_roi_head_forward.3} parent=5 // pred_check
      %p564 = pneg %p563
    $region46: #{resnet_roi_head_forward.3} parent=5 // pred_check_branch
      %566 = sbr.rel (%p564) target = $region48
    $region47: #{resnet_roi_head_forward.3} parent=5 // pred_region
      %s567 = ssub.s32 %s15, 2
    $region48: #{resnet_roi_head_forward.3} parent=5 // pred_fallthru
      _
  $region6: #{resnet_roi_head_forward.3} parent=0 // loop_footer
    %s19 = sadd.s32 1, %s15
  $region7: #{resnet_roi_head_forward.3} parent=0 // loop_footer_branch
    %14 = sbr.rel target = $region3
  $region8: #{resnet_roi_head_forward.3} parent=0 // loop_exit
    _

// kernel: resnet_roi_head_forward.2
$region0: #{resnet_roi_head_forward.2}
  #allocation0 [shape = 'u32[]', space=smem, size = 0x4, offset = 0x4, fixed_abs, tag = 'smem constant byte address 0x4 - core index']
  #allocation1 [shape = 'u32[144,128]{1,0:T(1,128)}', space=vmem, size = 0x12000, scoped, tag = 'internal scratch']
  #allocation2 [shape = 'f32[2,64,16]{2,1,0:T(8,128)}', space=vmem, size = 0x10000, scoped, tag = 'scratch operand']
  #allocation3 [shape = 'bf16[3,64,16]{2,1,0:T(16,128)(2,1)}', space=vmem, size = 0xc000, scoped, tag = 'scratch operand']
  #allocation4 [shape = 's32[1]{0}', space=sflag, size = 0x4, scoped, tag = 'scoped memory for resnet_roi_head_forward.2']
  #allocation5 [shape = 'u8[512]{0}', space=smem, size = 0x200, scoped, tag = 'prefetched SMEM operand 0']
  %s0 = inlined_call_operand.vmem [shape: s32[3], index: 0, kind: input, shape index: {}]
  %s1 = inlined_call_operand.vmem [shape: bf16[3,16,64], index: 1, kind: input, shape index: {}]
  %s2 = inlined_call_operand.vmem [shape: f32[4,2,64,16], index: 2, kind: input, shape index: {}]
  %s3 = inlined_call_operand.vmem [shape: f32[3,16], index: 3, kind: output, shape index: {}]
  %s4 = sld [smem:[#allocation0]]
  $region49: #{resnet_roi_head_forward.2} parent=0
    _
  %s6 = ssub.s32 1, %s4
  %s7 = scalar_select 0, %s6, %s4
  %s8 = sshll.u32 %s0, 4
  %s9 = int_to_ptr.vmem [resolvable:$true] %s8
  %11 = dma.vmem_to_smem %s9, 16, [#allocation5], [#allocation4]
  %12 = dma.done [#allocation4], 16
  %13 = sfence
  loop: start=0, step=1, limit=6
  $region2: #{resnet_roi_head_forward.2} parent=0 // loop_pre_header
    _
  $region3: #{resnet_roi_head_forward.2} parent=0 // loop_header
    %s15 = sphi 0, %s19
    %p16 = scmp.ge.s32.totalorder %s15, 6
    %s22 = sphi 0, %s34
    %s23 = sphi 0, %s30
    %s24 = sphi 0, %s22
    %s25 = sphi 0, %s23
    %s26 = sphi 0, %s24
    %s27 = sphi 0, %s25
    %s35 = sphi 0, %s35
    %s37 = sphi 0, %s35
    %s38 = sphi 0, %s37
    %s52 = sphi 0, %s38
    %s60 = sphi 0, %s62
    %s63 = sphi 0, %s60
    %s64 = sphi 0, %s63
    %s80 = sphi 0, %s64
    %s86 = sphi 0, %s88
    %s89 = sphi 0, %s86
    %s90 = sphi 0, %s89
    %s106 = sphi 0, %s90
  $region4: #{resnet_roi_head_forward.2} parent=0 // loop_header_branch
    %18 = sbr.rel (%p16) target = $region8
  $region5: #{resnet_roi_head_forward.2} parent=0 // loop_body
    %s20 = ssub.s32 %s15, 1
    %s21 = ssub.s32 %s15, 2
    %s28 = sadd.s32 1, %s23
    %p29 = scmp.ge.s32.totalorder %s28, 4
    %s30 = scalar_select %p29, 0, %s28
    %s31 = sadd.s32 1, %s22
    %s32 = scalar_select %p29, %s31, %s22
    %p33 = scmp.ge.s32.totalorder %s32, 1
    %s34 = scalar_select %p33, 0, %s32
    %s36 = sadd.s32 %s35, 1
    %p39 = scmp.eq.s32.totalorder %s15, 3
    %p40 = scmp.ne.s32.totalorder %s35, %s37
    %p41 = scmp.eq.s32.totalorder %s15, 0
    %p42 = por %p40, %p41
    %p43 = scmp.ne.s32.totalorder %s35, %s37
    %p44 = scmp.eq.s32.totalorder %s20, 3
    %p45 = por %p43, %p44
    %p46 = scmp.ne.s32.totalorder %s37, %s38
    %p47 = scmp.eq.s32.totalorder %s20, 0
    %p48 = por %p46, %p47
    %p49 = scmp.ne.s32.totalorder %s37, %s38
    %p50 = scmp.eq.s32.totalorder %s21, 3
    %p51 = por %p49, %p50
    %p53 = scmp.ne.s32.totalorder %s38, %s52
    %p54 = scmp.eq.s32.totalorder %s21, 0
    %p55 = por %p53, %p54
    %s56 = ssub.s32 %s23, %s30
    %s57 = ssub.s32 %s22, %s34
    %s58 = sor.u32 %s56, %s57
    %p59 = scmp.eq.s32.totalorder %s58, 0
    %s61 = sadd.s32 %s60, 1
    %s62 = scalar_select %p59, %s60, %s61
    %p65 = pneg %p59
    %p66 = scmp.eq.s32.totalorder %s15, 3
    %p67 = por %p65, %p66
    %p68 = scmp.ne.s32.totalorder %s60, %s63
    %p69 = scmp.eq.s32.totalorder %s15, 0
    %p70 = por %p68, %p69
    %p71 = scmp.ne.s32.totalorder %s60, %s63
    %p72 = scmp.eq.s32.totalorder %s20, 3
    %p73 = por %p71, %p72
    %p74 = scmp.ne.s32.totalorder %s63, %s64
    %p75 = scmp.eq.s32.totalorder %s20, 0
    %p76 = por %p74, %p75
    %p77 = scmp.ne.s32.totalorder %s63, %s64
    %p78 = scmp.eq.s32.totalorder %s21, 3
    %p79 = por %p77, %p78
    %p81 = scmp.ne.s32.totalorder %s64, %s80
    %p82 = scmp.eq.s32.totalorder %s21, 0
    %p83 = por %p81, %p82
    %s84 = ssub.s32 %s22, %s34
    %p85 = scmp.eq.s32.totalorder %s84, 0
    %s87 = sadd.s32 %s86, 1
    %s88 = scalar_select %p85, %s86, %s87
    %p91 = pneg %p85
    %p92 = scmp.eq.s32.totalorder %s15, 3
    %p93 = por %p91, %p92
    %p94 = scmp.ne.s32.totalorder %s86, %s89
    %p95 = scmp.eq.s32.totalorder %s15, 0
    %p96 = por %p94, %p95
    %p97 = scmp.ne.s32.totalorder %s86, %s89
    %p98 = scmp.eq.s32.totalorder %s20, 3
    %p99 = por %p97, %p98
    %p100 = scmp.ne.s32.totalorder %s89, %s90
    %p101 = scmp.eq.s32.totalorder %s20, 0
    %p102 = por %p100, %p101
    %p103 = scmp.ne.s32.totalorder %s89, %s90
    %p104 = scmp.eq.s32.totalorder %s21, 3
    %p105 = por %p103, %p104
    %p107 = scmp.ne.s32.totalorder %s90, %s106
    %p108 = scmp.eq.s32.totalorder %s21, 0
    %p109 = por %p107, %p108
    %p110 = scmp.le.s32.totalorder 1, %s15
    %p111 = scmp.lt.s32.totalorder %s15, 5
    %p112 = pnand %p110, %p111
    %p113 = pneg %p112
    // Predicated region
    $region9: #{resnet_roi_head_forward.2} parent=5 // pred_check
      _
    $region10: #{resnet_roi_head_forward.2} parent=5 // pred_check_branch
      %115 = sbr.rel (%p112) target = $region12
    $region11: #{resnet_roi_head_forward.2} parent=5 // pred_region
      %s116 = ssub.s32 %s15, 1
      // Predicated region
      $region13: #{resnet_roi_head_forward.2} parent=11 // pred_check
        %p117 = pneg %p48
      $region14: #{resnet_roi_head_forward.2} parent=11 // pred_check_branch
        %119 = sbr.rel (%p117) target = $region16
      $region15: #{resnet_roi_head_forward.2} parent=11 // pred_region
        _
      $region16: #{resnet_roi_head_forward.2} parent=11 // pred_fallthru
        _
    $region12: #{resnet_roi_head_forward.2} parent=5 // pred_fallthru
      _
    %p120 = scmp.lt.s32.totalorder %s15, 4
    // Predicated region
    $region17: #{resnet_roi_head_forward.2} parent=5 // pred_check
      %p121 = pneg %p120
    $region18: #{resnet_roi_head_forward.2} parent=5 // pred_check_branch
      %123 = sbr.rel (%p121) target = $region20
    $region19: #{resnet_roi_head_forward.2} parent=5 // pred_region
      // Predicated region
      $region21: #{resnet_roi_head_forward.2} parent=19 // pred_check
        %p124 = pneg %p70
      $region22: #{resnet_roi_head_forward.2} parent=19 // pred_check_branch
        %126 = sbr.rel (%p124) target = $region24
      $region23: #{resnet_roi_head_forward.2} parent=19 // pred_region
        %p127 = scmp.lt.s32.totalorder %s23, 3
        %s128 = scalar_select %p127, %s23, 3
        %p129 = scmp.lt.s32.totalorder %s22, 0
        %s130 = scalar_select %p129, %s22, 0
        %s131 = smul.addr %s128, 16
        %s132 = sadd.s32 %s130, %s131
        %s133 = smul.addr %s132, 8
        %s134 = scalar_lea.vmem %s2, %s133
      $region24: #{resnet_roi_head_forward.2} parent=19 // pred_fallthru
        _
    $region20: #{resnet_roi_head_forward.2} parent=5 // pred_fallthru
      _
    %p135 = scmp.le.s32.totalorder 1, %s15
    %p136 = scmp.lt.s32.totalorder %s15, 5
    %p137 = pnand %p135, %p136
    %p138 = pneg %p137
    // Predicated region
    $region25: #{resnet_roi_head_forward.2} parent=5 // pred_check
      _
    $region26: #{resnet_roi_head_forward.2} parent=5 // pred_check_branch
      %140 = sbr.rel (%p137) target = $region28
    $region27: #{resnet_roi_head_forward.2} parent=5 // pred_region
      %s141 = ssub.s32 %s15, 1
      %p142 = pneg %p48
      %p143 = pneg %p45
      %p144 = scmp.lt.s32.totalorder %s25, 3
      %s145 = scalar_select %p144, %s25, 3
      %p146 = scmp.lt.s32.totalorder %s24, 0
      %s147 = scalar_select %p146, %s24, 0
      %s148 = smul.addr %s145, 16
      %s149 = sadd.s32 %s147, %s148
      %s150 = smul.addr %s149, 8
      %s151 = scalar_lea.vmem %s2, %s150
      %p152 = pneg %p76
      %p153 = pneg %p73
      %p154 = pneg %p102
      %p155 = pneg %p99
      %p156 = scmp.lt.s32.totalorder %s24, 0
      %s157 = scalar_select %p156, %s24, 0
      %s158 = smul.addr %s157, 4
      %s159 = scalar_lea.vmem %s3, %s158
      %p160 = scmp.lt.s32.totalorder %s25, 3
      %s161 = scalar_select %p160, %s25, 3
      %p162 = scmp.lt.s32.totalorder %s24, 0
      %s163 = scalar_select %p162, %s24, 0
      %s164 = smul.addr %s161, 16
      %s165 = sadd.s32 %s163, %s164
      %s166 = smul.addr %s165, 8
      %s167 = scalar_lea.vmem %s2, %s166
      %p168 = scmp.lt.s32.totalorder %s24, 0
      %s169 = scalar_select %p168, %s24, 0
      %s170 = smul.addr %s169, 4
      %s171 = scalar_lea.vmem %s3, %s170
      %p173 = scmp.eq.s32.totalorder %s25, 0
      // Predicated region
      $region29: #{resnet_roi_head_forward.2} parent=27 // pred_check
        %p174 = pneg %p173
      $region30: #{resnet_roi_head_forward.2} parent=27 // pred_check_branch
        %176 = sbr.rel (%p174) target = $region32
      $region31: #{resnet_roi_head_forward.2} parent=27 // pred_region
        %vm177 = vcmask 130048
        %178 = vst.msk [vmem:[#allocation2] sm:$0xff] %vm177, 0.0
        %179 = vst.msk [vmem:[#allocation2 + $0x8] sm:$0xff] %vm177, 0.0
        %180 = vst.msk [vmem:[#allocation2 + $0x10] sm:$0xff] %vm177, 0.0
        %181 = vst.msk [vmem:[#allocation2 + $0x18] sm:$0xff] %vm177, 0.0
        %182 = vst.msk [vmem:[#allocation2 + $0x20] sm:$0xff] %vm177, 0.0
        %183 = vst.msk [vmem:[#allocation2 + $0x28] sm:$0xff] %vm177, 0.0
        %184 = vst.msk [vmem:[#allocation2 + $0x30] sm:$0xff] %vm177, 0.0
        %185 = vst.msk [vmem:[#allocation2 + $0x38] sm:$0xff] %vm177, 0.0
        %186 = vst.msk [vmem:[#allocation2 + $0x40] sm:$0xff] %vm177, 0.0
        %187 = vst.msk [vmem:[#allocation2 + $0x48] sm:$0xff] %vm177, 0.0
        %188 = vst.msk [vmem:[#allocation2 + $0x50] sm:$0xff] %vm177, 0.0
        %189 = vst.msk [vmem:[#allocation2 + $0x58] sm:$0xff] %vm177, 0.0
        %190 = vst.msk [vmem:[#allocation2 + $0x60] sm:$0xff] %vm177, 0.0
        %191 = vst.msk [vmem:[#allocation2 + $0x68] sm:$0xff] %vm177, 0.0
        %192 = vst.msk [vmem:[#allocation2 + $0x70] sm:$0xff] %vm177, 0.0
        %193 = vst.msk [vmem:[#allocation2 + $0x78] sm:$0xff] %vm177, 0.0
      $region32: #{resnet_roi_head_forward.2} parent=27 // pred_fallthru
        _
      %v194 = vld [vmem:[#allocation2] sm:$0xff]
      %v195 = vld [vmem:[#allocation2 + $0x8] sm:$0xff]
      %v196 = vld [vmem:[#allocation2 + $0x10] sm:$0xff]
      %v197 = vld [vmem:[#allocation2 + $0x18] sm:$0xff]
      %v198 = vld [vmem:[#allocation2 + $0x20] sm:$0xff]
      %v199 = vld [vmem:[#allocation2 + $0x28] sm:$0xff]
      %v200 = vld [vmem:[#allocation2 + $0x30] sm:$0xff]
      %v201 = vld [vmem:[#allocation2 + $0x38] sm:$0xff]
      %v202 = vld [vmem:[#allocation2 + $0x40] sm:$0xff]
      %v203 = vld [vmem:[#allocation2 + $0x48] sm:$0xff]
      %v204 = vld [vmem:[#allocation2 + $0x50] sm:$0xff]
      %v205 = vld [vmem:[#allocation2 + $0x58] sm:$0xff]
      %v206 = vld [vmem:[#allocation2 + $0x60] sm:$0xff]
      %v207 = vld [vmem:[#allocation2 + $0x68] sm:$0xff]
      %v208 = vld [vmem:[#allocation2 + $0x70] sm:$0xff]
      %v209 = vld [vmem:[#allocation2 + $0x78] sm:$0xff]
      %v210 = vld [vmem:[%s167] sm:$0xff]
      %v211 = vld [vmem:[%s167 + $0x8] sm:$0xff]
      %v212 = vld [vmem:[%s167 + $0x10] sm:$0xff]
      %v213 = vld [vmem:[%s167 + $0x18] sm:$0xff]
      %v214 = vld [vmem:[%s167 + $0x20] sm:$0xff]
      %v215 = vld [vmem:[%s167 + $0x28] sm:$0xff]
      %v216 = vld [vmem:[%s167 + $0x30] sm:$0xff]
      %v217 = vld [vmem:[%s167 + $0x38] sm:$0xff]
      %v218 = vld [vmem:[%s167 + $0x40] sm:$0xff]
      %v219 = vld [vmem:[%s167 + $0x48] sm:$0xff]
      %v220 = vld [vmem:[%s167 + $0x50] sm:$0xff]
      %v221 = vld [vmem:[%s167 + $0x58] sm:$0xff]
      %v222 = vld [vmem:[%s167 + $0x60] sm:$0xff]
      %v223 = vld [vmem:[%s167 + $0x68] sm:$0xff]
      %v224 = vld [vmem:[%s167 + $0x70] sm:$0xff]
      %v225 = vld [vmem:[%s167 + $0x78] sm:$0xff]
      %v226 = vadd.f32 %v194, %v210
      %v227 = vadd.f32 %v195, %v211
      %v228 = vadd.f32 %v196, %v212
      %v229 = vadd.f32 %v197, %v213
      %v230 = vadd.f32 %v198, %v214
      %v231 = vadd.f32 %v199, %v215
      %v232 = vadd.f32 %v200, %v216
      %v233 = vadd.f32 %v201, %v217
      %v234 = vadd.f32 %v202, %v218
      %v235 = vadd.f32 %v203, %v219
      %v236 = vadd.f32 %v204, %v220
      %v237 = vadd.f32 %v205, %v221
      %v238 = vadd.f32 %v206, %v222
      %v239 = vadd.f32 %v207, %v223
      %v240 = vadd.f32 %v208, %v224
      %v241 = vadd.f32 %v209, %v225
      %vm242 = vcmask 130048
      %243 = vst.msk [vmem:[#allocation2] sm:$0xff] %vm242, %v226
      %244 = vst.msk [vmem:[#allocation2 + $0x8] sm:$0xff] %vm242, %v227
      %245 = vst.msk [vmem:[#allocation2 + $0x10] sm:$0xff] %vm242, %v228
      %246 = vst.msk [vmem:[#allocation2 + $0x18] sm:$0xff] %vm242, %v229
      %247 = vst.msk [vmem:[#allocation2 + $0x20] sm:$0xff] %vm242, %v230
      %248 = vst.msk [vmem:[#allocation2 + $0x28] sm:$0xff] %vm242, %v231
      %249 = vst.msk [vmem:[#allocation2 + $0x30] sm:$0xff] %vm242, %v232
      %250 = vst.msk [vmem:[#allocation2 + $0x38] sm:$0xff] %vm242, %v233
      %251 = vst.msk [vmem:[#allocation2 + $0x40] sm:$0xff] %vm242, %v234
      %252 = vst.msk [vmem:[#allocation2 + $0x48] sm:$0xff] %vm242, %v235
      %253 = vst.msk [vmem:[#allocation2 + $0x50] sm:$0xff] %vm242, %v236
      %254 = vst.msk [vmem:[#allocation2 + $0x58] sm:$0xff] %vm242, %v237
      %255 = vst.msk [vmem:[#allocation2 + $0x60] sm:$0xff] %vm242, %v238
      %256 = vst.msk [vmem:[#allocation2 + $0x68] sm:$0xff] %vm242, %v239
      %257 = vst.msk [vmem:[#allocation2 + $0x70] sm:$0xff] %vm242, %v240
      %258 = vst.msk [vmem:[#allocation2 + $0x78] sm:$0xff] %vm242, %v241
      %p259 = scmp.eq.s32.totalorder %s25, 3
      // Predicated region
      $region33: #{resnet_roi_head_forward.2} parent=27 // pred_check
        %p260 = pneg %p259
      $region34: #{resnet_roi_head_forward.2} parent=27 // pred_check_branch
        %262 = sbr.rel (%p260) target = $region36
      $region35: #{resnet_roi_head_forward.2} parent=27 // pred_region
        %s263 = sld [smem:[#allocation5]]
        %s264 = smul.u32 %s263, 64
        %s265 = scalar_lea.vmem [#allocation2], %s264
        %v266 = vld [vmem:[%s265] sm:$0xff]
        %v267 = vld [vmem:[%s265 + $0x8] sm:$0xff]
        %v268 = vld [vmem:[%s265 + $0x10] sm:$0xff]
        %v269 = vld [vmem:[%s265 + $0x18] sm:$0xff]
        %v270 = vld [vmem:[%s265 + $0x20] sm:$0xff]
        %v271 = vld [vmem:[%s265 + $0x28] sm:$0xff]
        %v272 = vld [vmem:[%s265 + $0x30] sm:$0xff]
        %v273 = vld [vmem:[%s265 + $0x38] sm:$0xff]
        %v274 = vmul.f32 %v266, 0.25
        %v275 = vmul.f32 %v267, 0.25
        %v276 = vmul.f32 %v268, 0.25
        %v277 = vmul.f32 %v269, 0.25
        %v278 = vmul.f32 %v270, 0.25
        %v279 = vmul.f32 %v271, 0.25
        %v280 = vmul.f32 %v272, 0.25
        %v281 = vmul.f32 %v273, 0.25
        %v282 = vpack.c.bf16 %v275, %v274
        %v283 = vpack.c.bf16 %v277, %v276
        %v284 = vpack.c.bf16 %v279, %v278
        %v285 = vpack.c.bf16 %v281, %v280
        %286 = vst.msk [vmem:[#allocation3] sm:$0xff] %vm242, %v282
        %287 = vst.msk [vmem:[#allocation3 + $0x8] sm:$0xff] %vm242, %v283
        %288 = vst.msk [vmem:[#allocation3 + $0x10] sm:$0xff] %vm242, %v284
        %289 = vst.msk [vmem:[#allocation3 + $0x18] sm:$0xff] %vm242, %v285
        %s290 = sld [smem:[#allocation5 + $0x1]]
        %s291 = smul.u32 %s290, 64
        %s292 = scalar_lea.vmem [#allocation2], %s291
        %v293 = vld [vmem:[%s292] sm:$0xff]
        %v294 = vld [vmem:[%s292 + $0x8] sm:$0xff]
        %v295 = vld [vmem:[%s292 + $0x10] sm:$0xff]
        %v296 = vld [vmem:[%s292 + $0x18] sm:$0xff]
        %v297 = vld [vmem:[%s292 + $0x20] sm:$0xff]
        %v298 = vld [vmem:[%s292 + $0x28] sm:$0xff]
        %v299 = vld [vmem:[%s292 + $0x30] sm:$0xff]
        %v300 = vld [vmem:[%s292 + $0x38] sm:$0xff]
        %v301 = vmul.f32 %v293, 0.25
        %v302 = vmul.f32 %v294, 0.25
        %v303 = vmul.f32 %v295, 0.25
        %v304 = vmul.f32 %v296, 0.25
        %v305 = vmul.f32 %v297, 0.25
        %v306 = vmul.f32 %v298, 0.25
        %v307 = vmul.f32 %v299, 0.25
        %v308 = vmul.f32 %v300, 0.25
        %v309 = vpack.c.bf16 %v302, %v301
        %v310 = vpack.c.bf16 %v304, %v303
        %v311 = vpack.c.bf16 %v306, %v305
        %v312 = vpack.c.bf16 %v308, %v307
        %s313 = scalar_lea.vmem [#allocation3], 32
        %314 = vst.msk [vmem:[%s313] sm:$0xff] %vm242, %v309
        %315 = vst.msk [vmem:[%s313 + $0x8] sm:$0xff] %vm242, %v310
        %316 = vst.msk [vmem:[%s313 + $0x10] sm:$0xff] %vm242, %v311
        %317 = vst.msk [vmem:[%s313 + $0x18] sm:$0xff] %vm242, %v312
        %s318 = sld [smem:[#allocation5 + $0x2]]
        %s319 = smul.u32 %s318, 64
        %s320 = scalar_lea.vmem [#allocation2], %s319
        %v321 = vld [vmem:[%s320] sm:$0xff]
        %v322 = vld [vmem:[%s320 + $0x8] sm:$0xff]
        %v323 = vld [vmem:[%s320 + $0x10] sm:$0xff]
        %v324 = vld [vmem:[%s320 + $0x18] sm:$0xff]
        %v325 = vld [vmem:[%s320 + $0x20] sm:$0xff]
        %v326 = vld [vmem:[%s320 + $0x28] sm:$0xff]
        %v327 = vld [vmem:[%s320 + $0x30] sm:$0xff]
        %v328 = vld [vmem:[%s320 + $0x38] sm:$0xff]
        %v329 = vmul.f32 %v321, 0.25
        %v330 = vmul.f32 %v322, 0.25
        %v331 = vmul.f32 %v323, 0.25
        %v332 = vmul.f32 %v324, 0.25
        %v333 = vmul.f32 %v325, 0.25
        %v334 = vmul.f32 %v326, 0.25
        %v335 = vmul.f32 %v327, 0.25
        %v336 = vmul.f32 %v328, 0.25
        %v337 = vpack.c.bf16 %v330, %v329
        %v338 = vpack.c.bf16 %v332, %v331
        %v339 = vpack.c.bf16 %v334, %v333
        %v340 = vpack.c.bf16 %v336, %v335
        %s341 = scalar_lea.vmem [#allocation3], 64
        %342 = vst.msk [vmem:[%s341] sm:$0xff] %vm242, %v337
        %343 = vst.msk [vmem:[%s341 + $0x8] sm:$0xff] %vm242, %v338
        %344 = vst.msk [vmem:[%s341 + $0x10] sm:$0xff] %vm242, %v339
        %345 = vst.msk [vmem:[%s341 + $0x18] sm:$0xff] %vm242, %v340
        %v346 = vld [vmem:[%s1] sm:$0xf]
        %v347 = vld [vmem:[%s1 + $0x4] sm:$0xf]
        %v348 = vld [vmem:[%s1 + $0x8] sm:$0xf]
        %v349 = vld [vmem:[%s1 + $0xc] sm:$0xf]
        %v350 = vld [vmem:[%s1 + $0x10] sm:$0xf]
        %v351 = vld [vmem:[%s1 + $0x14] sm:$0xf]
        %v352 = vld [vmem:[#allocation3] sm:$0xff]
        %v353 = vld [vmem:[#allocation3 + $0x8] sm:$0xff]
        %v354 = vld [vmem:[#allocation3 + $0x10] sm:$0xff]
        %v355 = vld [vmem:[#allocation3 + $0x18] sm:$0xff]
        %v356 = vld [vmem:[#allocation3 + $0x20] sm:$0xff]
        %v357 = vld [vmem:[#allocation3 + $0x28] sm:$0xff]
        %v358 = vld [vmem:[#allocation3 + $0x30] sm:$0xff]
        %v359 = vld [vmem:[#allocation3 + $0x38] sm:$0xff]
        %v360 = vld [vmem:[#allocation3 + $0x40] sm:$0xff]
        %v361 = vld [vmem:[#allocation3 + $0x48] sm:$0xff]
        %v362 = vld [vmem:[#allocation3 + $0x50] sm:$0xff]
        %v363 = vld [vmem:[#allocation3 + $0x58] sm:$0xff]
        %v366 = vunpack.c.l.b16 %v346
        %v367 = vunpack.c.l.b16 %v347
        %v368 = vpack.c.b16 %v367, %v366
        %vm369 = vcmask 523264
        %v371 = vsel %vm369, %v368, 0
        %373 = vmatprep.subr.bf16.mxu0 0
        %374 = vmatpush1.bf16.msra.mxu0 %v352
        %375 = vmatprep.subr.bf16.mxu0 0
        %376 = vmatpush1.bf16.msra.mxu0 %v353
        %377 = vmatprep.subr.bf16.mxu0 0
        %378 = vmatpush1.bf16.msra.mxu0 %v354
        %379 = vmatprep.subr.bf16.mxu0 0
        %380 = vmatpush1.bf16.msra.mxu0 %v355
        %381 = vmatprep.subr.bf16.mxu0 0
        %382 = vmatpush1.bf16.msra.mxu0 0
        %383 = vmatprep.subr.bf16.mxu0 0
        %384 = vmatpush1.bf16.msra.mxu0 0
        %385 = vmatprep.subr.bf16.mxu0 0
        %386 = vmatpush1.bf16.msra.mxu0 0
        %387 = vmatprep.subr.bf16.mxu0 0
        %388 = vmatpush1.bf16.msra.mxu0 0
        %389 = vmatprep.subr.bf16.mxu0 0
        %390 = vmatpush1.bf16.msra.mxu0 0
        %391 = vmatprep.subr.bf16.mxu0 0
        %392 = vmatpush1.bf16.msra.mxu0 0
        %393 = vmatprep.subr.bf16.mxu0 0
        %394 = vmatpush1.bf16.msra.mxu0 0
        %395 = vmatprep.subr.bf16.mxu0 0
        %396 = vmatpush1.bf16.msra.mxu0 0
        %397 = vmatprep.subr.bf16.mxu0 0
        %398 = vmatpush1.bf16.msra.mxu0 0
        %399 = vmatprep.subr.bf16.mxu0 0
        %400 = vmatpush1.bf16.msra.mxu0 0
        %401 = vmatprep.subr.bf16.mxu0 0
        %402 = vmatpush1.bf16.msra.mxu0 0
        %403 = vmatprep.subr.bf16.mxu0 0
        %404 = vmatpush1.bf16.msra.mxu0 0
        %405 = vmatprep.mubr.bf16.mxu0 0
        %406 = vmatmul.mubr.bf16.gmra.mrb[0].mxu0 %v371
        %v407 = vpop.f32.mrb[0].mxu0
        %v408 = vadd.f32 0.0, %v407
        %v409 = vpop.f32.mrb[0].mxu0
        %v410 = vpop.f32.mrb[0].mxu0
        %v411 = vadd.f32 0.0, %v410
        %v412 = vpop.f32.mrb[0].mxu0
        %413 = vdwg.mxu0
        %v416 = vunpack.c.l.b16 %v348
        %v417 = vunpack.c.l.b16 %v349
        %v418 = vpack.c.b16 %v417, %v416
        %v420 = vsel %vm369, %v418, 0
        %422 = vmatprep.subr.bf16.mxu0 0
        %423 = vmatpush1.bf16.msra.mxu0 %v356
        %424 = vmatprep.subr.bf16.mxu0 0
        %425 = vmatpush1.bf16.msra.mxu0 %v357
        %426 = vmatprep.subr.bf16.mxu0 0
        %427 = vmatpush1.bf16.msra.mxu0 %v358
        %428 = vmatprep.subr.bf16.mxu0 0
        %429 = vmatpush1.bf16.msra.mxu0 %v359
        %430 = vmatprep.subr.bf16.mxu0 0
        %431 = vmatpush1.bf16.msra.mxu0 0
        %432 = vmatprep.subr.bf16.mxu0 0
        %433 = vmatpush1.bf16.msra.mxu0 0
        %434 = vmatprep.subr.bf16.mxu0 0
        %435 = vmatpush1.bf16.msra.mxu0 0
        %436 = vmatprep.subr.bf16.mxu0 0
        %437 = vmatpush1.bf16.msra.mxu0 0
        %438 = vmatprep.subr.bf16.mxu0 0
        %439 = vmatpush1.bf16.msra.mxu0 0
        %440 = vmatprep.subr.bf16.mxu0 0
        %441 = vmatpush1.bf16.msra.mxu0 0
        %442 = vmatprep.subr.bf16.mxu0 0
        %443 = vmatpush1.bf16.msra.mxu0 0
        %444 = vmatprep.subr.bf16.mxu0 0
        %445 = vmatpush1.bf16.msra.mxu0 0
        %446 = vmatprep.subr.bf16.mxu0 0
        %447 = vmatpush1.bf16.msra.mxu0 0
        %448 = vmatprep.subr.bf16.mxu0 0
        %449 = vmatpush1.bf16.msra.mxu0 0
        %450 = vmatprep.subr.bf16.mxu0 0
        %451 = vmatpush1.bf16.msra.mxu0 0
        %452 = vmatprep.subr.bf16.mxu0 0
        %453 = vmatpush1.bf16.msra.mxu0 0
        %454 = vmatprep.mubr.bf16.mxu0 0
        %455 = vmatmul.mubr.bf16.gmra.mrb[0].mxu0 %v420
        %v456 = vpop.f32.mrb[0].mxu0
        %v457 = vadd.f32 0.0, %v456
        %v458 = vpop.f32.mrb[0].mxu0
        %v459 = vpop.f32.mrb[0].mxu0
        %v460 = vadd.f32 0.0, %v459
        %v461 = vpop.f32.mrb[0].mxu0
        %462 = vdwg.mxu0
        %v465 = vunpack.c.l.b16 %v350
        %v466 = vunpack.c.l.b16 %v351
        %v467 = vpack.c.b16 %v466, %v465
        %v469 = vsel %vm369, %v467, 0
        %471 = vmatprep.subr.bf16.mxu0 0
        %472 = vmatpush1.bf16.msra.mxu0 %v360
        %473 = vmatprep.subr.bf16.mxu0 0
        %474 = vmatpush1.bf16.msra.mxu0 %v361
        %475 = vmatprep.subr.bf16.mxu0 0
        %476 = vmatpush1.bf16.msra.mxu0 %v362
        %477 = vmatprep.subr.bf16.mxu0 0
        %478 = vmatpush1.bf16.msra.mxu0 %v363
        %479 = vmatprep.subr.bf16.mxu0 0
        %480 = vmatpush1.bf16.msra.mxu0 0
        %481 = vmatprep.subr.bf16.mxu0 0
        %482 = vmatpush1.bf16.msra.mxu0 0
        %483 = vmatprep.subr.bf16.mxu0 0
        %484 = vmatpush1.bf16.msra.mxu0 0
        %485 = vmatprep.subr.bf16.mxu0 0
        %486 = vmatpush1.bf16.msra.mxu0 0
        %487 = vmatprep.subr.bf16.mxu0 0
        %488 = vmatpush1.bf16.msra.mxu0 0
        %489 = vmatprep.subr.bf16.mxu0 0
        %490 = vmatpush1.bf16.msra.mxu0 0
        %491 = vmatprep.subr.bf16.mxu0 0
        %492 = vmatpush1.bf16.msra.mxu0 0
        %493 = vmatprep.subr.bf16.mxu0 0
        %494 = vmatpush1.bf16.msra.mxu0 0
        %495 = vmatprep.subr.bf16.mxu0 0
        %496 = vmatpush1.bf16.msra.mxu0 0
        %497 = vmatprep.subr.bf16.mxu0 0
        %498 = vmatpush1.bf16.msra.mxu0 0
        %499 = vmatprep.subr.bf16.mxu0 0
        %500 = vmatpush1.bf16.msra.mxu0 0
        %501 = vmatprep.subr.bf16.mxu0 0
        %502 = vmatpush1.bf16.msra.mxu0 0
        %503 = vmatprep.mubr.bf16.mxu0 0
        %504 = vmatmul.mubr.bf16.gmra.mrb[0].mxu0 %v469
        %v505 = vpop.f32.mrb[0].mxu0
        %v506 = vadd.f32 0.0, %v505
        %v507 = vpop.f32.mrb[0].mxu0
        %v508 = vpop.f32.mrb[0].mxu0
        %v509 = vadd.f32 0.0, %v508
        %v510 = vpop.f32.mrb[0].mxu0
        %511 = vdwg.mxu0
        %v512 = vsel %vm242, %v408, -inf
        %v513 = vsel %vm242, %v411, -inf
        %v514 = vmax.f32 %v512, %v513
        %v515 = vrot.slane %v514, 4
        %v516 = vmax.f32 %v514, %v515
        %v517 = vrot.slane %v516, 2
        %v518 = vmax.f32 %v516, %v517
        %v519 = vrot.slane %v518, 1
        %v520 = vmax.f32 %v518, %v519
        %v521 = vsel %vm242, %v457, -inf
        %v522 = vsel %vm242, %v460, -inf
        %v523 = vmax.f32 %v521, %v522
        %v524 = vrot.slane %v523, 4
        %v525 = vmax.f32 %v523, %v524
        %v526 = vrot.slane %v525, 2
        %v527 = vmax.f32 %v525, %v526
        %v528 = vrot.slane %v527, 1
        %v529 = vmax.f32 %v527, %v528
        %v530 = vsel %vm242, %v506, -inf
        %v531 = vsel %vm242, %v509, -inf
        %v532 = vmax.f32 %v530, %v531
        %v533 = vrot.slane %v532, 4
        %v534 = vmax.f32 %v532, %v533
        %v535 = vrot.slane %v534, 2
        %v536 = vmax.f32 %v534, %v535
        %v537 = vrot.slane %v536, 1
        %v538 = vmax.f32 %v536, %v537
        %vm542 = vcmask 1041409
        %v543 = vsel %vm542, %v529, %v520
        %vm544 = vcmask 1042434
        %v545 = vsel %vm544, %v538, %v543
        %vm547 = vcmask 124928
        %548 = vst.msk [vmem:[%s171] sm:$0x7] %vm547, %v545
      $region36: #{resnet_roi_head_forward.2} parent=27 // pred_fallthru
        _
      %p549 = scmp.lt.s32.totalorder %s24, 0
      %s550 = scalar_select %p549, %s24, 0
      %s551 = smul.addr %s550, 4
      %s552 = scalar_lea.vmem %s3, %s551
      // Predicated region
      $region37: #{resnet_roi_head_forward.2} parent=27 // pred_check
        %p553 = pneg %p99
      $region38: #{resnet_roi_head_forward.2} parent=27 // pred_check_branch
        %555 = sbr.rel (%p553) target = $region40
      $region39: #{resnet_roi_head_forward.2} parent=27 // pred_region
        _
      $region40: #{resnet_roi_head_forward.2} parent=27 // pred_fallthru
        _
      // Predicated region
      $region41: #{resnet_roi_head_forward.2} parent=27 // pred_check
        %p556 = pneg %p99
      $region42: #{resnet_roi_head_forward.2} parent=27 // pred_check_branch
        %558 = sbr.rel (%p556) target = $region44
      $region43: #{resnet_roi_head_forward.2} parent=27 // pred_region
        %p559 = scmp.lt.s32.totalorder %s24, 0
        %s560 = scalar_select %p559, %s24, 0
        %s561 = smul.addr %s560, 4
        %s562 = scalar_lea.vmem %s3, %s561
      $region44: #{resnet_roi_head_forward.2} parent=27 // pred_fallthru
        _
    $region28: #{resnet_roi_head_forward.2} parent=5 // pred_fallthru
      _
    %p563 = scmp.le.s32.totalorder 2, %s15
    // Predicated region
    $region45: #{resnet_roi_head_forward.2} parent=5 // pred_check
      %p564 = pneg %p563
    $region46: #{resnet_roi_head_forward.2} parent=5 // pred_check_branch
      %566 = sbr.rel (%p564) target = $region48
    $region47: #{resnet_roi_head_forward.2} parent=5 // pred_region
      %s567 = ssub.s32 %s15, 2
    $region48: #{resnet_roi_head_forward.2} parent=5 // pred_fallthru
      _
  $region6: #{resnet_roi_head_forward.2} parent=0 // loop_footer
    %s19 = sadd.s32 1, %s15
  $region7: #{resnet_roi_head_forward.2} parent=0 // loop_footer_branch
    %14 = sbr.rel target = $region3
  $region8: #{resnet_roi_head_forward.2} parent=0 // loop_exit
    _

</llo_original>
